<compile_context>
chip_gen: v5e
topology: v5e:2x2
jax: 0.10.0
libtpu: 0.0.40
codegen_flags: <defaults>
</compile_context>

<pallas_src>
import functools

import jax
import jax.numpy as jnp
from jax.experimental import pallas as pl
from jax.experimental.pallas import tpu as pltpu


# --------------------------------------------------------------------------
# helpers
# --------------------------------------------------------------------------

def _round_up(x, m):
    return ((x + m - 1) // m) * m


# --------------------------------------------------------------------------
# Kernel 1: tiled, software-pipelined linear  y = x @ w + b
# --------------------------------------------------------------------------

def _matmul_kernel(x_ref, w_ref, b_ref, o_ref, acc_ref):
    k = pl.program_id(2)

    @pl.when(k == 0)
    def _init():
        acc_ref[...] = jnp.zeros_like(acc_ref)

    acc_ref[...] += jnp.dot(x_ref[...], w_ref[...],
                            preferred_element_type=jnp.float32)

    @pl.when(k == pl.num_programs(2) - 1)
    def _finalize():
        o_ref[...] = acc_ref[...] + b_ref[...]


def pallas_linear(x, w, b, *, tm=256, tn=256, tk=256):
    """x: (M, K) f32, w: (K, N) f32, b: (N,) f32 -> (M, N) f32."""
    M, K = x.shape
    Kw, N = w.shape
    assert K == Kw
    # Clamp tiles to (8,128)-rounded full dims; pad inputs so the grid divides evenly.
    tm = min(tm, _round_up(M, 8))
    tn = min(tn, _round_up(N, 128))
    tk = min(tk, _round_up(K, 128))
    Mp, Kp, Np = _round_up(M, tm), _round_up(K, tk), _round_up(N, tn)

    xp = x if (Mp, Kp) == (M, K) else jnp.pad(x, ((0, Mp - M), (0, Kp - K)))
    wp = w if (Kp, Np) == (K, N) else jnp.pad(w, ((0, Kp - K), (0, Np - N)))
    bp = b if Np == N else jnp.pad(b, (0, Np - N))

    out = pl.pallas_call(
        _matmul_kernel,
        out_shape=jax.ShapeDtypeStruct((Mp, Np), jnp.float32),
        grid=(Mp // tm, Np // tn, Kp // tk),
        in_specs=[
            pl.BlockSpec((tm, tk), lambda i, j, k: (i, k)),
            pl.BlockSpec((tk, tn), lambda i, j, k: (k, j)),
            pl.BlockSpec((1, tn), lambda i, j, k: (0, j)),
        ],
        out_specs=pl.BlockSpec((tm, tn), lambda i, j, k: (i, j)),
        scratch_shapes=[pltpu.VMEM((tm, tn), jnp.float32)],
        compiler_params=pltpu.CompilerParams(
            dimension_semantics=("parallel", "parallel", "arbitrary")),
    )(xp, wp, bp.reshape(1, Np))

    if (Mp, Np) != (M, N):
        out = out[:M, :N]
    return out


# --------------------------------------------------------------------------
# Kernel 2: bidirectional GRU recurrence (both directions in one grid sweep)
# --------------------------------------------------------------------------

def _bigru_scan_kernel(gxf_ref, gxb_ref, mf_ref, mb_ref,
                       whf_ref, bhf_ref, whb_ref, bhb_ref,
                       h0f_ref, h0b_ref,
                       outf_ref, outb_ref,
                       hf_ref, hb_ref, *, hidden_size):
    t = pl.program_id(0)
    H = hidden_size

    @pl.when(t == 0)
    def _init():
        hf_ref[...] = h0f_ref[...]
        hb_ref[...] = h0b_ref[...]

    def gru_step(gx, gh, m, h_prev):
        # PyTorch GRU gate order: [r, z, n]
        r = jax.nn.sigmoid(gx[:, :H] + gh[:, :H])
        z = jax.nn.sigmoid(gx[:, H:2 * H] + gh[:, H:2 * H])
        n = jnp.tanh(gx[:, 2 * H:] + r * gh[:, 2 * H:])
        h_new = (1.0 - z) * n + z * h_prev
        h_next = m * h_new + (1.0 - m) * h_prev   # packed seq: freeze hidden at pads
        y = m * h_new                             # pad_packed: zero output at pads
        return h_next, y

    hf = hf_ref[...]
    ghf = jnp.dot(hf, whf_ref[...], preferred_element_type=jnp.float32) + bhf_ref[...]
    hf_next, yf = gru_step(gxf_ref[0], ghf, mf_ref[0], hf)

    hb = hb_ref[...]
    ghb = jnp.dot(hb, whb_ref[...], preferred_element_type=jnp.float32) + bhb_ref[...]
    hb_next, yb = gru_step(gxb_ref[0], ghb, mb_ref[0], hb)

    hf_ref[...] = hf_next
    hb_ref[...] = hb_next
    outf_ref[0] = yf
    outb_ref[0] = yb


def bigru_layer_scan(gates_f, gates_b, step_mask, whf, bhf, whb, bhb, h0f, h0b):
    """gates_*: (S, B, 3H); step_mask: (S, B, 1); w_hh: (H, 3H); b_hh: (3H,);
    h0*: (B, H).  Returns (out_fwd, out_bwd) each (S, B, H)."""
    S, B, G = gates_f.shape
    H = G // 3
    kernel = functools.partial(_bigru_scan_kernel, hidden_size=H)
    return pl.pallas_call(
        kernel,
        out_shape=(jax.ShapeDtypeStruct((S, B, H), jnp.float32),
                   jax.ShapeDtypeStruct((S, B, H), jnp.float32)),
        grid=(S,),
        in_specs=[
            pl.BlockSpec((1, B, G), lambda t: (t, 0, 0)),          # gates fwd @ t
            pl.BlockSpec((1, B, G), lambda t: (S - 1 - t, 0, 0)),  # gates bwd @ S-1-t
            pl.BlockSpec((1, B, 1), lambda t: (t, 0, 0)),          # mask fwd
            pl.BlockSpec((1, B, 1), lambda t: (S - 1 - t, 0, 0)),  # mask bwd
            pl.BlockSpec((H, G), lambda t: (0, 0)),                # W_hh fwd (resident)
            pl.BlockSpec((1, G), lambda t: (0, 0)),                # b_hh fwd
            pl.BlockSpec((H, G), lambda t: (0, 0)),                # W_hh bwd (resident)
            pl.BlockSpec((1, G), lambda t: (0, 0)),                # b_hh bwd
            pl.BlockSpec((B, H), lambda t: (0, 0)),                # h0 fwd
            pl.BlockSpec((B, H), lambda t: (0, 0)),                # h0 bwd
        ],
        out_specs=[
            pl.BlockSpec((1, B, H), lambda t: (t, 0, 0)),
            pl.BlockSpec((1, B, H), lambda t: (S - 1 - t, 0, 0)),
        ],
        scratch_shapes=[pltpu.VMEM((B, H), jnp.float32),
                        pltpu.VMEM((B, H), jnp.float32)],
        compiler_params=pltpu.CompilerParams(dimension_semantics=("arbitrary",)),
    )(gates_f, gates_b, step_mask, step_mask,
      whf, bhf.reshape(1, G), whb, bhb.reshape(1, G), h0f, h0b)


# --------------------------------------------------------------------------
# Kernel 3: combine directions -> (pade_outputs, problem_output)
# --------------------------------------------------------------------------

def _combine_kernel(outf_ref, outb_ref, pade_ref, prob_ref, acc_ref):
    t = pl.program_id(0)
    s = pl.num_programs(0)
    yf = outf_ref[0]
    yb = outb_ref[0]
    pade_ref[0] = yf + yb                   # out[:, :, :H] + out[:, :, H:]

    @pl.when(t == 0)
    def _init():
        acc_ref[...] = yb                   # out[0, :, H:]

    @pl.when(t == s - 1)
    def _finalize():
        prob_ref[...] = acc_ref[...] + yf   # + out[-1, :, :H]


def combine_directions(out_f, out_b):
    S, B, H = out_f.shape
    return pl.pallas_call(
        _combine_kernel,
        out_shape=(jax.ShapeDtypeStruct((S, B, H), jnp.float32),
                   jax.ShapeDtypeStruct((B, H), jnp.float32)),
        grid=(S,),
        in_specs=[pl.BlockSpec((1, B, H), lambda t: (t, 0, 0)),
                  pl.BlockSpec((1, B, H), lambda t: (t, 0, 0))],
        out_specs=[pl.BlockSpec((1, B, H), lambda t: (t, 0, 0)),
                   pl.BlockSpec((B, H), lambda t: (0, 0))],
        scratch_shapes=[pltpu.VMEM((B, H), jnp.float32)],
        compiler_params=pltpu.CompilerParams(dimension_semantics=("arbitrary",)),
    )(out_f, out_b)


# --------------------------------------------------------------------------
# parameters
# --------------------------------------------------------------------------

def init_params(key, *, vocab_size, max_pos, embedding_size, hidden_size, n_layers):
    keys = jax.random.split(key, 2 + n_layers)

    def emb(k, shape):
        return (0.02 * jax.random.normal(k, shape)).astype(jnp.float32)

    bound = 1.0 / float(hidden_size) ** 0.5

    def uni(k, shape):
        return jax.random.uniform(k, shape, jnp.float32, -bound, bound)

    params = {
        "word_emb": emb(keys[0], (vocab_size, embedding_size)),
        "pos_emb": emb(keys[1], (max_pos, embedding_size)),
        "layers": [],
    }
    for l in range(n_layers):
        in_dim = embedding_size if l == 0 else 2 * hidden_size
        lk = jax.random.split(keys[2 + l], 8)
        layer = {}
        for d, name in enumerate(("fwd", "bwd")):
            kk = lk[4 * d: 4 * (d + 1)]
            layer[name] = {
                # Stored pre-transposed: x @ W_ih^T -> (in_dim, 3H); h @ W_hh^T -> (H, 3H)
                "w_ih": uni(kk[0], (in_dim, 3 * hidden_size)),
                "b_ih": uni(kk[1], (3 * hidden_size,)),
                "w_hh": uni(kk[2], (hidden_size, 3 * hidden_size)),
                "b_hh": uni(kk[3], (3 * hidden_size,)),
            }
        params["layers"].append(layer)
    return params


# --------------------------------------------------------------------------
# forward pass
# --------------------------------------------------------------------------

def default_embedding(params, input_seqs, attention_mask):
    # TODO(synk): the reference forwards to an external pretrained encoder (HF BERT)
    # passed in as `embedding`; replaced by a deterministic word+position lookup
    # stand-in, so `attention_mask` is unused here.
    del attention_mask
    _, S = input_seqs.shape
    return (params["word_emb"][input_seqs]
            + params["pos_emb"][:S][None, :, :]).astype(jnp.float32)   # (B, S, E)


def encoder_seq_gru_forward(params, input_seqs, input_lengths, mask=None, hidden=None):
    """input_seqs: (B, S) int32; input_lengths: (B,) int32; mask: (B, S) (1 = pad).
    Returns (pade_outputs (S, B, H), problem_output (B, H)) matching the PyTorch forward."""
    B, S = input_seqs.shape
    H = params["layers"][0]["fwd"]["w_hh"].shape[0]
    n_layers = len(params["layers"])

    if mask is None:
        mask = (jnp.arange(S)[None, :] >= input_lengths[:, None]).astype(jnp.int32)
    float_mask = 1.0 - mask.astype(jnp.float32)     # attention mask (1 = attend)

    # embedded = embedding(input_seqs, attention_mask=float_mask)[0].transpose(0, 1)
    embedded = default_embedding(params, input_seqs, float_mask)   # (B, S, E)
    embedded = jnp.swapaxes(embedded, 0, 1)                        # (S, B, E)

    # pack_padded_sequence / pad_packed_sequence emulated with a (t, b) validity mask:
    # hidden state frozen and output zeroed for t >= input_lengths[b].
    step_mask = (jnp.arange(S)[:, None]
                 < input_lengths[None, :]).astype(jnp.float32)[:, :, None]   # (S, B, 1)

    if hidden is None:                               # pade_hidden = hidden (None -> zeros)
        hidden = jnp.zeros((2 * n_layers, B, H), jnp.float32)

    x = embedded.reshape(S * B, -1)
    out_f = out_b = None
    for l, layer in enumerate(params["layers"]):
        # nn.GRU inter-layer dropout is train-only -> identity in this eval forward.
        gates_f = pallas_linear(x, layer["fwd"]["w_ih"],
                                layer["fwd"]["b_ih"]).reshape(S, B, 3 * H)
        gates_b = pallas_linear(x, layer["bwd"]["w_ih"],
                                layer["bwd"]["b_ih"]).reshape(S, B, 3 * H)
        out_f, out_b = bigru_layer_scan(
            gates_f, gates_b, step_mask,
            layer["fwd"]["w_hh"], layer["fwd"]["b_hh"],
            layer["bwd"]["w_hh"], layer["bwd"]["b_hh"],
            hidden[2 * l], hidden[2 * l + 1])
        x = jnp.concatenate([out_f, out_b], axis=-1).reshape(S * B, 2 * H)

    # problem_output = out[-1, :, :H] + out[0, :, H:];  pade_outputs = out[..:H] + out[..H:]
    pade_outputs, problem_output = combine_directions(out_f, out_b)
    return pade_outputs, problem_output


# --------------------------------------------------------------------------
# demo
# --------------------------------------------------------------------------

if __name__ == "__main__":
    S, B = 8, 2
    VOCAB = 64
    EMB = 32        # embedding_size (768 in the reference default; small for the demo)
    HIDDEN = 32     # hidden_size
    N_LAYERS = 2

    root = jax.random.PRNGKey(0)
    k_tok, k_par = jax.random.split(root)

    params = init_params(k_par, vocab_size=VOCAB, max_pos=64, embedding_size=EMB,
                         hidden_size=HIDDEN, n_layers=N_LAYERS)

    input_seqs = jax.random.randint(k_tok, (B, S), 0, VOCAB, dtype=jnp.int32)
    input_lengths = jnp.array([S, S - 2], jnp.int32)                 # descending, like packing
    mask = (jnp.arange(S)[None, :] >= input_lengths[:, None]).astype(jnp.int32)  # 1 = pad

    forward = jax.jit(encoder_seq_gru_forward)
    pade_outputs, problem_output = forward(params, input_seqs, input_lengths, mask)

    jax.block_until_ready(pade_outputs)
    jax.block_until_ready(problem_output)

    assert pade_outputs.shape == (S, B, HIDDEN)
    assert problem_output.shape == (B, HIDDEN)
    assert bool(jnp.all(jnp.isfinite(pade_outputs)))
    assert bool(jnp.all(jnp.isfinite(problem_output)))
    print("KERNEL_OK")
</pallas_src>

<mosaic_0001>
module attributes {stable_mosaic.version = 11 : i64} {
  func.func @_matmul_kernel(%arg0: i32, %arg1: i32, %arg2: i32, %arg3: memref<16x128xf32, #tpu.memory_space<vmem>>, %arg4: memref<128x128xf32, #tpu.memory_space<vmem>>, %arg5: memref<1x128xf32, #tpu.memory_space<vmem>>, %arg6: memref<16x128xf32, #tpu.memory_space<vmem>>, %arg7: memref<16x128xf32, #tpu.memory_space<vmem>>) attributes {dimension_semantics = [#tpu.dimension_semantics<parallel>, #tpu.dimension_semantics<parallel>, #tpu.dimension_semantics<arbitrary>], iteration_bounds = array<i64: 1, 1, 1>, scalar_prefetch = 0 : i64, scratch_operands = 1 : i64, tpu.core_type = #tpu.core_type<tc>, window_params = [{transform_indices = @transform_0, window_bounds = array<i64: 16, 128>}, {transform_indices = @transform_1, window_bounds = array<i64: 128, 128>}, {transform_indices = @transform_2, window_bounds = array<i64: 1, 128>}, {transform_indices = @transform_3, window_bounds = array<i64: 16, 128>}]} {
    %c0_i32 = arith.constant 0 : i32
    %0 = arith.cmpi eq, %arg2, %c0_i32 : i32
    %1 = arith.extui %0 : i1 to i32
    %c0_i32_0 = arith.constant 0 : i32
    %2 = arith.cmpi ne, %1, %c0_i32_0 : i32
    scf.if %2 {
      %cst_10 = arith.constant 0.000000e+00 : f32
      %12 = vector.broadcast %cst_10 : f32 to vector<16x128xf32>
      %c0_11 = arith.constant 0 : index
      %c0_12 = arith.constant 0 : index
      %13 = vector.load %arg7[%c0_11, %c0_12] : memref<16x128xf32, #tpu.memory_space<vmem>>, vector<16x128xf32>
      tpu.vector_store %arg7[%c0_11, %c0_12], %12 {strides = array<i32>} : memref<16x128xf32, #tpu.memory_space<vmem>>, vector<16x128xf32>,
    } else {
    }
    %c0 = arith.constant 0 : index
    %c0_1 = arith.constant 0 : index
    %3 = vector.load %arg7[%c0, %c0_1] : memref<16x128xf32, #tpu.memory_space<vmem>>, vector<16x128xf32>
    %c0_2 = arith.constant 0 : index
    %c0_3 = arith.constant 0 : index
    %4 = vector.load %arg3[%c0_2, %c0_3] : memref<16x128xf32, #tpu.memory_space<vmem>>, vector<16x128xf32>
    %c0_4 = arith.constant 0 : index
    %c0_5 = arith.constant 0 : index
    %5 = vector.load %arg4[%c0_4, %c0_5] : memref<128x128xf32, #tpu.memory_space<vmem>>, vector<128x128xf32>
    %cst = arith.constant dense<0.000000e+00> : vector<16x128xf32>
    %6 = tpu.matmul %4, %5, %cst {dimension_numbers = #tpu.dot_dimension_numbers<[1], [0], [0], [1], [0, 0, 1, 1], [], []>} : vector<16x128xf32>, vector<128x128xf32>, vector<16x128xf32> -> vector<16x128xf32>
    %7 = arith.addf %3, %6 : vector<16x128xf32>
    %c0_6 = arith.constant 0 : index
    %c0_7 = arith.constant 0 : index
    %8 = vector.load %arg7[%c0_6, %c0_7] : memref<16x128xf32, #tpu.memory_space<vmem>>, vector<16x128xf32>
    tpu.vector_store %arg7[%c0_6, %c0_7], %7 {strides = array<i32>} : memref<16x128xf32, #tpu.memory_space<vmem>>, vector<16x128xf32>,
    %c0_i32_8 = arith.constant 0 : i32
    %9 = arith.cmpi eq, %arg2, %c0_i32_8 : i32
    %10 = arith.extui %9 : i1 to i32
    %c0_i32_9 = arith.constant 0 : i32
    %11 = arith.cmpi ne, %10, %c0_i32_9 : i32
    scf.if %11 {
      %c0_10 = arith.constant 0 : index
      %c0_11 = arith.constant 0 : index
      %12 = vector.load %arg7[%c0_10, %c0_11] : memref<16x128xf32, #tpu.memory_space<vmem>>, vector<16x128xf32>
      %c0_12 = arith.constant 0 : index
      %c0_13 = arith.constant 0 : index
      %13 = vector.load %arg5[%c0_12, %c0_13] : memref<1x128xf32, #tpu.memory_space<vmem>>, vector<1x128xf32>
      %14 = vector.broadcast %13 : vector<1x128xf32> to vector<16x128xf32>
      %15 = arith.addf %12, %14 : vector<16x128xf32>
      %c0_14 = arith.constant 0 : index
      %c0_15 = arith.constant 0 : index
      %16 = vector.load %arg6[%c0_14, %c0_15] : memref<16x128xf32, #tpu.memory_space<vmem>>, vector<16x128xf32>
      tpu.vector_store %arg6[%c0_14, %c0_15], %15 {strides = array<i32>} : memref<16x128xf32, #tpu.memory_space<vmem>>, vector<16x128xf32>,
    } else {
    }
    return
  }
  func.func @transform_0(%arg0: i32, %arg1: i32, %arg2: i32) -> (i32, i32) {
    %c0_i32 = arith.constant 0 : i32
    return %arg0, %arg2 : i32, i32
  }
  func.func @transform_1(%arg0: i32, %arg1: i32, %arg2: i32) -> (i32, i32) {
    %c0_i32 = arith.constant 0 : i32
    return %arg2, %arg1 : i32, i32
  }
  func.func @transform_2(%arg0: i32, %arg1: i32, %arg2: i32) -> (i32, i32) {
    %c0_i32 = arith.constant 0 : i32
    %c0_i32_0 = arith.constant 0 : i32
    return %c0_i32, %arg1 : i32, i32
  }
  func.func @transform_3(%arg0: i32, %arg1: i32, %arg2: i32) -> (i32, i32) {
    %c0_i32 = arith.constant 0 : i32
    return %arg0, %arg1 : i32, i32
  }
}

module attributes {stable_mosaic.version = 11 : i64} {
  func.func @_bigru_scan_kernel(%arg0: i32, %arg1: memref<1x2x96xf32, #tpu.memory_space<vmem>>, %arg2: memref<1x2x96xf32, #tpu.memory_space<vmem>>, %arg3: memref<1x2x1xf32, #tpu.memory_space<vmem>>, %arg4: memref<1x2x1xf32, #tpu.memory_space<vmem>>, %arg5: memref<32x96xf32, #tpu.memory_space<vmem>>, %arg6: memref<1x96xf32, #tpu.memory_space<vmem>>, %arg7: memref<32x96xf32, #tpu.memory_space<vmem>>, %arg8: memref<1x96xf32, #tpu.memory_space<vmem>>, %arg9: memref<2x32xf32, #tpu.memory_space<vmem>>, %arg10: memref<2x32xf32, #tpu.memory_space<vmem>>, %arg11: memref<1x2x32xf32, #tpu.memory_space<vmem>>, %arg12: memref<1x2x32xf32, #tpu.memory_space<vmem>>, %arg13: memref<2x32xf32, #tpu.memory_space<vmem>>, %arg14: memref<2x32xf32, #tpu.memory_space<vmem>>) attributes {dimension_semantics = [#tpu.dimension_semantics<arbitrary>], iteration_bounds = array<i64: 8>, scalar_prefetch = 0 : i64, scratch_operands = 2 : i64, tpu.core_type = #tpu.core_type<tc>, window_params = [{transform_indices = @transform_0, window_bounds = array<i64: 1, 2, 96>}, {transform_indices = @transform_1, window_bounds = array<i64: 1, 2, 96>}, {transform_indices = @transform_2, window_bounds = array<i64: 1, 2, 1>}, {transform_indices = @transform_3, window_bounds = array<i64: 1, 2, 1>}, {pipeline_mode = #tpu.pipeline_mode<synchronous>, transform_indices = @transform_4, window_bounds = array<i64: 32, 96>}, {pipeline_mode = #tpu.pipeline_mode<synchronous>, transform_indices = @transform_5, window_bounds = array<i64: 1, 96>}, {pipeline_mode = #tpu.pipeline_mode<synchronous>, transform_indices = @transform_6, window_bounds = array<i64: 32, 96>}, {pipeline_mode = #tpu.pipeline_mode<synchronous>, transform_indices = @transform_7, window_bounds = array<i64: 1, 96>}, {pipeline_mode = #tpu.pipeline_mode<synchronous>, transform_indices = @transform_8, window_bounds = array<i64: 2, 32>}, {pipeline_mode = #tpu.pipeline_mode<synchronous>, transform_indices = @transform_9, window_bounds = array<i64: 2, 32>}, {transform_indices = @transform_10, window_bounds = array<i64: 1, 2, 32>}, {transform_indices = @transform_11, window_bounds = array<i64: 1, 2, 32>}]} {
    %c0_i32 = arith.constant 0 : i32
    %0 = arith.cmpi eq, %arg0, %c0_i32 : i32
    %1 = arith.extui %0 : i1 to i32
    %c0_i32_0 = arith.constant 0 : i32
    %2 = arith.cmpi ne, %1, %c0_i32_0 : i32
    scf.if %2 {
      %c0_43 = arith.constant 0 : index
      %c0_44 = arith.constant 0 : index
      %101 = vector.load %arg9[%c0_43, %c0_44] : memref<2x32xf32, #tpu.memory_space<vmem>>, vector<2x32xf32>
      %c0_45 = arith.constant 0 : index
      %c0_46 = arith.constant 0 : index
      %102 = vector.load %arg13[%c0_45, %c0_46] : memref<2x32xf32, #tpu.memory_space<vmem>>, vector<2x32xf32>
      tpu.vector_store %arg13[%c0_45, %c0_46], %101 {strides = array<i32>} : memref<2x32xf32, #tpu.memory_space<vmem>>, vector<2x32xf32>,
      %c0_47 = arith.constant 0 : index
      %c0_48 = arith.constant 0 : index
      %103 = vector.load %arg10[%c0_47, %c0_48] : memref<2x32xf32, #tpu.memory_space<vmem>>, vector<2x32xf32>
      %c0_49 = arith.constant 0 : index
      %c0_50 = arith.constant 0 : index
      %104 = vector.load %arg14[%c0_49, %c0_50] : memref<2x32xf32, #tpu.memory_space<vmem>>, vector<2x32xf32>
      tpu.vector_store %arg14[%c0_49, %c0_50], %103 {strides = array<i32>} : memref<2x32xf32, #tpu.memory_space<vmem>>, vector<2x32xf32>,
    } else {
    }
    %c0 = arith.constant 0 : index
    %c0_1 = arith.constant 0 : index
    %3 = vector.load %arg13[%c0, %c0_1] : memref<2x32xf32, #tpu.memory_space<vmem>>, vector<2x32xf32>
    %c0_2 = arith.constant 0 : index
    %c0_3 = arith.constant 0 : index
    %4 = vector.load %arg5[%c0_2, %c0_3] : memref<32x96xf32, #tpu.memory_space<vmem>>, vector<32x96xf32>
    %cst = arith.constant dense<0.000000e+00> : vector<2x96xf32>
    %5 = tpu.matmul %3, %4, %cst {dimension_numbers = #tpu.dot_dimension_numbers<[1], [0], [0], [1], [0, 0, 1, 1], [], []>} : vector<2x32xf32>, vector<32x96xf32>, vector<2x96xf32> -> vector<2x96xf32>
    %c0_4 = arith.constant 0 : index
    %c0_5 = arith.constant 0 : index
    %6 = vector.load %arg6[%c0_4, %c0_5] : memref<1x96xf32, #tpu.memory_space<vmem>>, vector<1x96xf32>
    %7 = vector.broadcast %6 : vector<1x96xf32> to vector<2x96xf32>
    %8 = arith.addf %5, %7 : vector<2x96xf32>
    %c0_6 = arith.constant 0 : index
    %c0_7 = arith.constant 0 : index
    %c0_8 = arith.constant 0 : index
    %9 = vector.load %arg1[%c0_6, %c0_7, %c0_8] : memref<1x2x96xf32, #tpu.memory_space<vmem>>, vector<1x2x96xf32>
    %10 = vector.shape_cast %9 : vector<1x2x96xf32> to vector<2x96xf32>
    %c0_9 = arith.constant 0 : index
    %c0_10 = arith.constant 0 : index
    %c0_11 = arith.constant 0 : index
    %11 = vector.load %arg3[%c0_9, %c0_10, %c0_11] : memref<1x2x1xf32, #tpu.memory_space<vmem>>, vector<1x2x1xf32>
    %12 = vector.shape_cast %11 : vector<1x2x1xf32> to vector<2x1xf32>
    %13 = vector.extract_strided_slice %10 {offsets = [0, 0], sizes = [2, 32], strides = [1, 1]} : vector<2x96xf32> to vector<2x32xf32>
    %14 = vector.extract_strided_slice %8 {offsets = [0, 0], sizes = [2, 32], strides = [1, 1]} : vector<2x96xf32> to vector<2x32xf32>
    %15 = arith.addf %13, %14 : vector<2x32xf32>
    %16 = arith.negf %15 : vector<2x32xf32>
    %17 = math.exp %16 : vector<2x32xf32>
    %cst_12 = arith.constant 1.000000e+00 : f32
    %18 = vector.broadcast %cst_12 : f32 to vector<2x32xf32>
    %19 = arith.addf %18, %17 : vector<2x32xf32>
    %20 = arith.divf %18, %19 : vector<2x32xf32>
    %21 = vector.extract_strided_slice %10 {offsets = [0, 32], sizes = [2, 32], strides = [1, 1]} : vector<2x96xf32> to vector<2x32xf32>
    %22 = vector.extract_strided_slice %8 {offsets = [0, 32], sizes = [2, 32], strides = [1, 1]} : vector<2x96xf32> to vector<2x32xf32>
    %23 = arith.addf %21, %22 : vector<2x32xf32>
    %24 = arith.negf %23 : vector<2x32xf32>
    %25 = math.exp %24 : vector<2x32xf32>
    %cst_13 = arith.constant 1.000000e+00 : f32
    %26 = vector.broadcast %cst_13 : f32 to vector<2x32xf32>
    %27 = arith.addf %26, %25 : vector<2x32xf32>
    %28 = arith.divf %26, %27 : vector<2x32xf32>
    %29 = vector.extract_strided_slice %10 {offsets = [0, 64], sizes = [2, 32], strides = [1, 1]} : vector<2x96xf32> to vector<2x32xf32>
    %30 = vector.extract_strided_slice %8 {offsets = [0, 64], sizes = [2, 32], strides = [1, 1]} : vector<2x96xf32> to vector<2x32xf32>
    %31 = arith.mulf %20, %30 : vector<2x32xf32>
    %32 = arith.addf %29, %31 : vector<2x32xf32>
    %33 = math.tanh %32 : vector<2x32xf32>
    %cst_14 = arith.constant 1.000000e+00 : f32
    %34 = vector.broadcast %cst_14 : f32 to vector<2x32xf32>
    %35 = arith.subf %34, %28 : vector<2x32xf32>
    %36 = arith.mulf %35, %33 : vector<2x32xf32>
    %37 = arith.mulf %28, %3 : vector<2x32xf32>
    %38 = arith.addf %36, %37 : vector<2x32xf32>
    %39 = vector.broadcast %12 : vector<2x1xf32> to vector<2x32xf32>
    %40 = arith.mulf %39, %38 : vector<2x32xf32>
    %cst_15 = arith.constant 1.000000e+00 : f32
    %41 = vector.broadcast %cst_15 : f32 to vector<2x1xf32>
    %42 = arith.subf %41, %12 : vector<2x1xf32>
    %43 = vector.broadcast %42 : vector<2x1xf32> to vector<2x32xf32>
    %44 = arith.mulf %43, %3 : vector<2x32xf32>
    %45 = arith.addf %40, %44 : vector<2x32xf32>
    %46 = vector.broadcast %12 : vector<2x1xf32> to vector<2x32xf32>
    %47 = arith.mulf %46, %38 : vector<2x32xf32>
    %c0_16 = arith.constant 0 : index
    %c0_17 = arith.constant 0 : index
    %48 = vector.load %arg14[%c0_16, %c0_17] : memref<2x32xf32, #tpu.memory_space<vmem>>, vector<2x32xf32>
    %c0_18 = arith.constant 0 : index
    %c0_19 = arith.constant 0 : index
    %49 = vector.load %arg7[%c0_18, %c0_19] : memref<32x96xf32, #tpu.memory_space<vmem>>, vector<32x96xf32>
    %cst_20 = arith.constant dense<0.000000e+00> : vector<2x96xf32>
    %50 = tpu.matmul %48, %49, %cst_20 {dimension_numbers = #tpu.dot_dimension_numbers<[1], [0], [0], [1], [0, 0, 1, 1], [], []>} : vector<2x32xf32>, vector<32x96xf32>, vector<2x96xf32> -> vector<2x96xf32>
    %c0_21 = arith.constant 0 : index
    %c0_22 = arith.constant 0 : index
    %51 = vector.load %arg8[%c0_21, %c0_22] : memref<1x96xf32, #tpu.memory_space<vmem>>, vector<1x96xf32>
    %52 = vector.broadcast %51 : vector<1x96xf32> to vector<2x96xf32>
    %53 = arith.addf %50, %52 : vector<2x96xf32>
    %c0_23 = arith.constant 0 : index
    %c0_24 = arith.constant 0 : index
    %c0_25 = arith.constant 0 : index
    %54 = vector.load %arg2[%c0_23, %c0_24, %c0_25] : memref<1x2x96xf32, #tpu.memory_space<vmem>>, vector<1x2x96xf32>
    %55 = vector.shape_cast %54 : vector<1x2x96xf32> to vector<2x96xf32>
    %c0_26 = arith.constant 0 : index
    %c0_27 = arith.constant 0 : index
    %c0_28 = arith.constant 0 : index
    %56 = vector.load %arg4[%c0_26, %c0_27, %c0_28] : memref<1x2x1xf32, #tpu.memory_space<vmem>>, vector<1x2x1xf32>
    %57 = vector.shape_cast %56 : vector<1x2x1xf32> to vector<2x1xf32>
    %58 = vector.extract_strided_slice %55 {offsets = [0, 0], sizes = [2, 32], strides = [1, 1]} : vector<2x96xf32> to vector<2x32xf32>
    %59 = vector.extract_strided_slice %53 {offsets = [0, 0], sizes = [2, 32], strides = [1, 1]} : vector<2x96xf32> to vector<2x32xf32>
    %60 = arith.addf %58, %59 : vector<2x32xf32>
    %61 = arith.negf %60 : vector<2x32xf32>
    %62 = math.exp %61 : vector<2x32xf32>
    %cst_29 = arith.constant 1.000000e+00 : f32
    %63 = vector.broadcast %cst_29 : f32 to vector<2x32xf32>
    %64 = arith.addf %63, %62 : vector<2x32xf32>
    %65 = arith.divf %63, %64 : vector<2x32xf32>
    %66 = vector.extract_strided_slice %55 {offsets = [0, 32], sizes = [2, 32], strides = [1, 1]} : vector<2x96xf32> to vector<2x32xf32>
    %67 = vector.extract_strided_slice %53 {offsets = [0, 32], sizes = [2, 32], strides = [1, 1]} : vector<2x96xf32> to vector<2x32xf32>
    %68 = arith.addf %66, %67 : vector<2x32xf32>
    %69 = arith.negf %68 : vector<2x32xf32>
    %70 = math.exp %69 : vector<2x32xf32>
    %cst_30 = arith.constant 1.000000e+00 : f32
    %71 = vector.broadcast %cst_30 : f32 to vector<2x32xf32>
    %72 = arith.addf %71, %70 : vector<2x32xf32>
    %73 = arith.divf %71, %72 : vector<2x32xf32>
    %74 = vector.extract_strided_slice %55 {offsets = [0, 64], sizes = [2, 32], strides = [1, 1]} : vector<2x96xf32> to vector<2x32xf32>
    %75 = vector.extract_strided_slice %53 {offsets = [0, 64], sizes = [2, 32], strides = [1, 1]} : vector<2x96xf32> to vector<2x32xf32>
    %76 = arith.mulf %65, %75 : vector<2x32xf32>
    %77 = arith.addf %74, %76 : vector<2x32xf32>
    %78 = math.tanh %77 : vector<2x32xf32>
    %cst_31 = arith.constant 1.000000e+00 : f32
    %79 = vector.broadcast %cst_31 : f32 to vector<2x32xf32>
    %80 = arith.subf %79, %73 : vector<2x32xf32>
    %81 = arith.mulf %80, %78 : vector<2x32xf32>
    %82 = arith.mulf %73, %48 : vector<2x32xf32>
    %83 = arith.addf %81, %82 : vector<2x32xf32>
    %84 = vector.broadcast %57 : vector<2x1xf32> to vector<2x32xf32>
    %85 = arith.mulf %84, %83 : vector<2x32xf32>
    %cst_32 = arith.constant 1.000000e+00 : f32
    %86 = vector.broadcast %cst_32 : f32 to vector<2x1xf32>
    %87 = arith.subf %86, %57 : vector<2x1xf32>
    %88 = vector.broadcast %87 : vector<2x1xf32> to vector<2x32xf32>
    %89 = arith.mulf %88, %48 : vector<2x32xf32>
    %90 = arith.addf %85, %89 : vector<2x32xf32>
    %91 = vector.broadcast %57 : vector<2x1xf32> to vector<2x32xf32>
    %92 = arith.mulf %91, %83 : vector<2x32xf32>
    %c0_33 = arith.constant 0 : index
    %c0_34 = arith.constant 0 : index
    %93 = vector.load %arg13[%c0_33, %c0_34] : memref<2x32xf32, #tpu.memory_space<vmem>>, vector<2x32xf32>
    tpu.vector_store %arg13[%c0_33, %c0_34], %45 {strides = array<i32>} : memref<2x32xf32, #tpu.memory_space<vmem>>, vector<2x32xf32>,
    %c0_35 = arith.constant 0 : index
    %c0_36 = arith.constant 0 : index
    %94 = vector.load %arg14[%c0_35, %c0_36] : memref<2x32xf32, #tpu.memory_space<vmem>>, vector<2x32xf32>
    tpu.vector_store %arg14[%c0_35, %c0_36], %90 {strides = array<i32>} : memref<2x32xf32, #tpu.memory_space<vmem>>, vector<2x32xf32>,
    %c0_37 = arith.constant 0 : index
    %c0_38 = arith.constant 0 : index
    %c0_39 = arith.constant 0 : index
    %95 = vector.load %arg11[%c0_37, %c0_38, %c0_39] : memref<1x2x32xf32, #tpu.memory_space<vmem>>, vector<1x2x32xf32>
    %96 = vector.shape_cast %95 : vector<1x2x32xf32> to vector<2x32xf32>
    %97 = vector.shape_cast %47 : vector<2x32xf32> to vector<1x2x32xf32>
    tpu.vector_store %arg11[%c0_37, %c0_38, %c0_39], %97 {strides = array<i32>} : memref<1x2x32xf32, #tpu.memory_space<vmem>>, vector<1x2x32xf32>,
    %c0_40 = arith.constant 0 : index
    %c0_41 = arith.constant 0 : index
    %c0_42 = arith.constant 0 : index
    %98 = vector.load %arg12[%c0_40, %c0_41, %c0_42] : memref<1x2x32xf32, #tpu.memory_space<vmem>>, vector<1x2x32xf32>
    %99 = vector.shape_cast %98 : vector<1x2x32xf32> to vector<2x32xf32>
    %100 = vector.shape_cast %92 : vector<2x32xf32> to vector<1x2x32xf32>
    tpu.vector_store %arg12[%c0_40, %c0_41, %c0_42], %100 {strides = array<i32>} : memref<1x2x32xf32, #tpu.memory_space<vmem>>, vector<1x2x32xf32>,
    return
  }
  func.func @transform_0(%arg0: i32) -> (i32, i32, i32) {
    %c0_i32 = arith.constant 0 : i32
    %c0_i32_0 = arith.constant 0 : i32
    %c0_i32_1 = arith.constant 0 : i32
    return %arg0, %c0_i32, %c0_i32_0 : i32, i32, i32
  }
  func.func @transform_1(%arg0: i32) -> (i32, i32, i32) {
    %c7_i32 = arith.constant 7 : i32
    %0 = arith.subi %c7_i32, %arg0 : i32
    %c0_i32 = arith.constant 0 : i32
    %c0_i32_0 = arith.constant 0 : i32
    %c0_i32_1 = arith.constant 0 : i32
    return %0, %c0_i32, %c0_i32_0 : i32, i32, i32
  }
  func.func @transform_2(%arg0: i32) -> (i32, i32, i32) {
    %c0_i32 = arith.constant 0 : i32
    %c0_i32_0 = arith.constant 0 : i32
    %c0_i32_1 = arith.constant 0 : i32
    return %arg0, %c0_i32, %c0_i32_0 : i32, i32, i32
  }
  func.func @transform_3(%arg0: i32) -> (i32, i32, i32) {
    %c7_i32 = arith.constant 7 : i32
    %0 = arith.subi %c7_i32, %arg0 : i32
    %c0_i32 = arith.constant 0 : i32
    %c0_i32_0 = arith.constant 0 : i32
    %c0_i32_1 = arith.constant 0 : i32
    return %0, %c0_i32, %c0_i32_0 : i32, i32, i32
  }
  func.func @transform_4(%arg0: i32) -> (i32, i32) {
    %c0_i32 = arith.constant 0 : i32
    %c0_i32_0 = arith.constant 0 : i32
    %c0_i32_1 = arith.constant 0 : i32
    return %c0_i32, %c0_i32_0 : i32, i32
  }
  func.func @transform_5(%arg0: i32) -> (i32, i32) {
    %c0_i32 = arith.constant 0 : i32
    %c0_i32_0 = arith.constant 0 : i32
    %c0_i32_1 = arith.constant 0 : i32
    return %c0_i32, %c0_i32_0 : i32, i32
  }
  func.func @transform_6(%arg0: i32) -> (i32, i32) {
    %c0_i32 = arith.constant 0 : i32
    %c0_i32_0 = arith.constant 0 : i32
    %c0_i32_1 = arith.constant 0 : i32
    return %c0_i32, %c0_i32_0 : i32, i32
  }
  func.func @transform_7(%arg0: i32) -> (i32, i32) {
    %c0_i32 = arith.constant 0 : i32
    %c0_i32_0 = arith.constant 0 : i32
    %c0_i32_1 = arith.constant 0 : i32
    return %c0_i32, %c0_i32_0 : i32, i32
  }
  func.func @transform_8(%arg0: i32) -> (i32, i32) {
    %c0_i32 = arith.constant 0 : i32
    %c0_i32_0 = arith.constant 0 : i32
    %c0_i32_1 = arith.constant 0 : i32
    return %c0_i32, %c0_i32_0 : i32, i32
  }
  func.func @transform_9(%arg0: i32) -> (i32, i32) {
    %c0_i32 = arith.constant 0 : i32
    %c0_i32_0 = arith.constant 0 : i32
    %c0_i32_1 = arith.constant 0 : i32
    return %c0_i32, %c0_i32_0 : i32, i32
  }
  func.func @transform_10(%arg0: i32) -> (i32, i32, i32) {
    %c0_i32 = arith.constant 0 : i32
    %c0_i32_0 = arith.constant 0 : i32
    %c0_i32_1 = arith.constant 0 : i32
    return %arg0, %c0_i32, %c0_i32_0 : i32, i32, i32
  }
  func.func @transform_11(%arg0: i32) -> (i32, i32, i32) {
    %c7_i32 = arith.constant 7 : i32
    %0 = arith.subi %c7_i32, %arg0 : i32
    %c0_i32 = arith.constant 0 : i32
    %c0_i32_0 = arith.constant 0 : i32
    %c0_i32_1 = arith.constant 0 : i32
    return %0, %c0_i32, %c0_i32_0 : i32, i32, i32
  }
}

module attributes {stable_mosaic.version = 11 : i64} {
  func.func @_combine_kernel(%arg0: i32, %arg1: memref<1x2x32xf32, #tpu.memory_space<vmem>>, %arg2: memref<1x2x32xf32, #tpu.memory_space<vmem>>, %arg3: memref<1x2x32xf32, #tpu.memory_space<vmem>>, %arg4: memref<2x32xf32, #tpu.memory_space<vmem>>, %arg5: memref<2x32xf32, #tpu.memory_space<vmem>>) attributes {dimension_semantics = [#tpu.dimension_semantics<arbitrary>], iteration_bounds = array<i64: 8>, scalar_prefetch = 0 : i64, scratch_operands = 1 : i64, tpu.core_type = #tpu.core_type<tc>, window_params = [{transform_indices = @transform_0, window_bounds = array<i64: 1, 2, 32>}, {transform_indices = @transform_1, window_bounds = array<i64: 1, 2, 32>}, {transform_indices = @transform_2, window_bounds = array<i64: 1, 2, 32>}, {pipeline_mode = #tpu.pipeline_mode<synchronous>, transform_indices = @transform_3, window_bounds = array<i64: 2, 32>}]} {
    %c0 = arith.constant 0 : index
    %c0_0 = arith.constant 0 : index
    %c0_1 = arith.constant 0 : index
    %0 = vector.load %arg1[%c0, %c0_0, %c0_1] : memref<1x2x32xf32, #tpu.memory_space<vmem>>, vector<1x2x32xf32>
    %1 = vector.shape_cast %0 : vector<1x2x32xf32> to vector<2x32xf32>
    %c0_2 = arith.constant 0 : index
    %c0_3 = arith.constant 0 : index
    %c0_4 = arith.constant 0 : index
    %2 = vector.load %arg2[%c0_2, %c0_3, %c0_4] : memref<1x2x32xf32, #tpu.memory_space<vmem>>, vector<1x2x32xf32>
    %3 = vector.shape_cast %2 : vector<1x2x32xf32> to vector<2x32xf32>
    %4 = arith.addf %1, %3 : vector<2x32xf32>
    %c0_5 = arith.constant 0 : index
    %c0_6 = arith.constant 0 : index
    %c0_7 = arith.constant 0 : index
    %5 = vector.load %arg3[%c0_5, %c0_6, %c0_7] : memref<1x2x32xf32, #tpu.memory_space<vmem>>, vector<1x2x32xf32>
    %6 = vector.shape_cast %5 : vector<1x2x32xf32> to vector<2x32xf32>
    %7 = vector.shape_cast %4 : vector<2x32xf32> to vector<1x2x32xf32>
    tpu.vector_store %arg3[%c0_5, %c0_6, %c0_7], %7 {strides = array<i32>} : memref<1x2x32xf32, #tpu.memory_space<vmem>>, vector<1x2x32xf32>,
    %c0_i32 = arith.constant 0 : i32
    %8 = arith.cmpi eq, %arg0, %c0_i32 : i32
    %9 = arith.extui %8 : i1 to i32
    %c0_i32_8 = arith.constant 0 : i32
    %10 = arith.cmpi ne, %9, %c0_i32_8 : i32
    scf.if %10 {
      %c0_10 = arith.constant 0 : index
      %c0_11 = arith.constant 0 : index
      %14 = vector.load %arg5[%c0_10, %c0_11] : memref<2x32xf32, #tpu.memory_space<vmem>>, vector<2x32xf32>
      tpu.vector_store %arg5[%c0_10, %c0_11], %3 {strides = array<i32>} : memref<2x32xf32, #tpu.memory_space<vmem>>, vector<2x32xf32>,
    } else {
    }
    %c7_i32 = arith.constant 7 : i32
    %11 = arith.cmpi eq, %arg0, %c7_i32 : i32
    %12 = arith.extui %11 : i1 to i32
    %c0_i32_9 = arith.constant 0 : i32
    %13 = arith.cmpi ne, %12, %c0_i32_9 : i32
    scf.if %13 {
      %c0_10 = arith.constant 0 : index
      %c0_11 = arith.constant 0 : index
      %14 = vector.load %arg5[%c0_10, %c0_11] : memref<2x32xf32, #tpu.memory_space<vmem>>, vector<2x32xf32>
      %15 = arith.addf %14, %1 : vector<2x32xf32>
      %c0_12 = arith.constant 0 : index
      %c0_13 = arith.constant 0 : index
      %16 = vector.load %arg4[%c0_12, %c0_13] : memref<2x32xf32, #tpu.memory_space<vmem>>, vector<2x32xf32>
      tpu.vector_store %arg4[%c0_12, %c0_13], %15 {strides = array<i32>} : memref<2x32xf32, #tpu.memory_space<vmem>>, vector<2x32xf32>,
    } else {
    }
    return
  }
  func.func @transform_0(%arg0: i32) -> (i32, i32, i32) {
    %c0_i32 = arith.constant 0 : i32
    %c0_i32_0 = arith.constant 0 : i32
    %c0_i32_1 = arith.constant 0 : i32
    return %arg0, %c0_i32, %c0_i32_0 : i32, i32, i32
  }
  func.func @transform_1(%arg0: i32) -> (i32, i32, i32) {
    %c0_i32 = arith.constant 0 : i32
    %c0_i32_0 = arith.constant 0 : i32
    %c0_i32_1 = arith.constant 0 : i32
    return %arg0, %c0_i32, %c0_i32_0 : i32, i32, i32
  }
  func.func @transform_2(%arg0: i32) -> (i32, i32, i32) {
    %c0_i32 = arith.constant 0 : i32
    %c0_i32_0 = arith.constant 0 : i32
    %c0_i32_1 = arith.constant 0 : i32
    return %arg0, %c0_i32, %c0_i32_0 : i32, i32, i32
  }
  func.func @transform_3(%arg0: i32) -> (i32, i32) {
    %c0_i32 = arith.constant 0 : i32
    %c0_i32_0 = arith.constant 0 : i32
    %c0_i32_1 = arith.constant 0 : i32
    return %c0_i32, %c0_i32_0 : i32, i32
  }
}

</mosaic_0001>

<llo_original>
// kernel: encoder_seq_gru_forward.13
$region0: #{encoder_seq_gru_forward.13}
  #allocation0 [shape = 'u32[]', space=smem, size = 0x4, offset = 0x4, fixed_abs, tag = 'smem constant byte address 0x4 - core index']
  #allocation1 [shape = 'u32[72,128]{1,0:T(1,128)}', space=vmem, size = 0x9000, scoped, tag = 'internal scratch']
  #allocation2 [shape = 'f32[2,32]{1,0:T(2,128)}', space=vmem, size = 0x400, scoped, tag = 'scratch operand']
  %s0 = inlined_call_operand.vmem [shape: f32[8,2,32], index: 0, kind: input, shape index: {}]
  %s1 = inlined_call_operand.vmem [shape: f32[8,2,32], index: 1, kind: input, shape index: {}]
  %s2 = inlined_call_operand.hbm [shape: f32[8,2,32], index: 2, kind: output, shape index: {0}]
  %s3 = inlined_call_operand.hbm [shape: f32[2,32], index: 3, kind: output, shape index: {1}]
  %4 = xla_tuple %s2, %s3
  %s5 = sld [smem:[#allocation0]]
  $region57: #{encoder_seq_gru_forward.13} parent=0
    _
  %s7 = ssub.s32 1, %s5
  %s8 = scalar_select 0, %s7, %s5
  $region1: #{encoder_seq_gru_forward.13} parent=0
    #allocation3 [shape = 'u8[2048]{0}', space=vmem, size = 0x800, scoped, tag = 'output window, operand 0']
    #allocation4 [shape = 's32[2]{0}', space=sflag, size = 0x8, scoped, tag = 'scoped memory for encoder_seq_gru_forward.13']
    #allocation5 [shape = 'u8[1024]{0}', space=vmem, size = 0x400, scoped, tag = 'output window, operand 1, single buffered']
    #allocation6 [shape = 's32[1]{0}', space=sflag, size = 0x4, scoped, tag = 'scoped memory for encoder_seq_gru_forward.13']
    %9 = vsyncpa [#allocation4], 0
    %s10 = scalar_lea.sflag [#allocation4], 1
    %11 = vsyncpa %s10, 0
    %12 = vsyncpa [#allocation6], 0
    loop: start=0, step=1, limit=10
    $region2: #{encoder_seq_gru_forward.13} parent=1 // loop_pre_header
      _
    $region3: #{encoder_seq_gru_forward.13} parent=1 // loop_header
      %s14 = sphi 0, %s18
      %p15 = scmp.ge.s32.totalorder %s14, 10
      %s24 = sphi 0, %s26
      %s27 = sphi 0, %s24
      %s28 = sphi 0, %s27
      %s44 = sphi 0, %s28
      %s50 = sphi 0, %s52
      %s53 = sphi 0, %s50
      %s54 = sphi 0, %s53
      %s70 = sphi 0, %s54
      %s76 = sphi 0, %s78
      %s79 = sphi 0, %s76
      %s80 = sphi 0, %s79
      %s96 = sphi 0, %s80
      %s100 = sphi 0, %s100
      %s102 = sphi 0, %s100
      %s103 = sphi 0, %s102
      %s117 = sphi 0, %s103
    $region4: #{encoder_seq_gru_forward.13} parent=1 // loop_header_branch
      %17 = sbr.rel (%p15) target = $region8
    $region5: #{encoder_seq_gru_forward.13} parent=1 // loop_body
      %s19 = ssub.s32 %s14, 1
      %s20 = ssub.s32 %s14, 2
      %s21 = sadd.s32 %s14, 1
      %s22 = ssub.s32 %s14, %s21
      %p23 = scmp.eq.s32.totalorder %s22, 0
      %s25 = sadd.s32 %s24, 1
      %s26 = scalar_select %p23, %s24, %s25
      %p29 = pneg %p23
      %p30 = scmp.eq.s32.totalorder %s14, 7
      %p31 = por %p29, %p30
      %p32 = scmp.ne.s32.totalorder %s24, %s27
      %p33 = scmp.eq.s32.totalorder %s14, 0
      %p34 = por %p32, %p33
      %p35 = scmp.ne.s32.totalorder %s24, %s27
      %p36 = scmp.eq.s32.totalorder %s19, 7
      %p37 = por %p35, %p36
      %p38 = scmp.ne.s32.totalorder %s27, %s28
      %p39 = scmp.eq.s32.totalorder %s19, 0
      %p40 = por %p38, %p39
      %p41 = scmp.ne.s32.totalorder %s27, %s28
      %p42 = scmp.eq.s32.totalorder %s20, 7
      %p43 = por %p41, %p42
      %p45 = scmp.ne.s32.totalorder %s28, %s44
      %p46 = scmp.eq.s32.totalorder %s20, 0
      %p47 = por %p45, %p46
      %s48 = ssub.s32 %s14, %s21
      %p49 = scmp.eq.s32.totalorder %s48, 0
      %s51 = sadd.s32 %s50, 1
      %s52 = scalar_select %p49, %s50, %s51
      %p55 = pneg %p49
      %p56 = scmp.eq.s32.totalorder %s14, 7
      %p57 = por %p55, %p56
      %p58 = scmp.ne.s32.totalorder %s50, %s53
      %p59 = scmp.eq.s32.totalorder %s14, 0
      %p60 = por %p58, %p59
      %p61 = scmp.ne.s32.totalorder %s50, %s53
      %p62 = scmp.eq.s32.totalorder %s19, 7
      %p63 = por %p61, %p62
      %p64 = scmp.ne.s32.totalorder %s53, %s54
      %p65 = scmp.eq.s32.totalorder %s19, 0
      %p66 = por %p64, %p65
      %p67 = scmp.ne.s32.totalorder %s53, %s54
      %p68 = scmp.eq.s32.totalorder %s20, 7
      %p69 = por %p67, %p68
      %p71 = scmp.ne.s32.totalorder %s54, %s70
      %p72 = scmp.eq.s32.totalorder %s20, 0
      %p73 = por %p71, %p72
      %s74 = ssub.s32 %s14, %s21
      %p75 = scmp.eq.s32.totalorder %s74, 0
      %s77 = sadd.s32 %s76, 1
      %s78 = scalar_select %p75, %s76, %s77
      %p81 = pneg %p75
      %p82 = scmp.eq.s32.totalorder %s14, 7
      %p83 = por %p81, %p82
      %p84 = scmp.ne.s32.totalorder %s76, %s79
      %p85 = scmp.eq.s32.totalorder %s14, 0
      %p86 = por %p84, %p85
      %p87 = scmp.ne.s32.totalorder %s76, %s79
      %p88 = scmp.eq.s32.totalorder %s19, 7
      %p89 = por %p87, %p88
      %p90 = scmp.ne.s32.totalorder %s79, %s80
      %p91 = scmp.eq.s32.totalorder %s19, 0
      %p92 = por %p90, %p91
      %p93 = scmp.ne.s32.totalorder %s79, %s80
      %p94 = scmp.eq.s32.totalorder %s20, 7
      %p95 = por %p93, %p94
      %p97 = scmp.ne.s32.totalorder %s80, %s96
      %p98 = scmp.eq.s32.totalorder %s20, 0
      %p99 = por %p97, %p98
      %s101 = sadd.s32 %s100, 1
      %p104 = scmp.eq.s32.totalorder %s14, 7
      %p105 = scmp.ne.s32.totalorder %s100, %s102
      %p106 = scmp.eq.s32.totalorder %s14, 0
      %p107 = por %p105, %p106
      %p108 = scmp.ne.s32.totalorder %s100, %s102
      %p109 = scmp.eq.s32.totalorder %s19, 7
      %p110 = por %p108, %p109
      %p111 = scmp.ne.s32.totalorder %s102, %s103
      %p112 = scmp.eq.s32.totalorder %s19, 0
      %p113 = por %p111, %p112
      %p114 = scmp.ne.s32.totalorder %s102, %s103
      %p115 = scmp.eq.s32.totalorder %s20, 7
      %p116 = por %p114, %p115
      %p118 = scmp.ne.s32.totalorder %s103, %s117
      %p119 = scmp.eq.s32.totalorder %s20, 0
      %p120 = por %p118, %p119
      %p121 = scmp.le.s32.totalorder 1, %s14
      %p122 = scmp.lt.s32.totalorder %s14, 9
      %p123 = pnand %p121, %p122
      %p124 = pneg %p123
      // Predicated region
      $region9: #{encoder_seq_gru_forward.13} parent=5 // pred_check
        _
      $region10: #{encoder_seq_gru_forward.13} parent=5 // pred_check_branch
        %126 = sbr.rel (%p123) target = $region12
      $region11: #{encoder_seq_gru_forward.13} parent=5 // pred_region
        %s127 = ssub.s32 %s14, 1
      $region12: #{encoder_seq_gru_forward.13} parent=5 // pred_fallthru
        _
      %p128 = scmp.lt.s32.totalorder %s14, 8
      // Predicated region
      $region13: #{encoder_seq_gru_forward.13} parent=5 // pred_check
        %p129 = pneg %p128
      $region14: #{encoder_seq_gru_forward.13} parent=5 // pred_check_branch
        %131 = sbr.rel (%p129) target = $region16
      $region15: #{encoder_seq_gru_forward.13} parent=5 // pred_region
        // Predicated region
        $region17: #{encoder_seq_gru_forward.13} parent=15 // pred_check
          %p132 = pneg %p34
        $region18: #{encoder_seq_gru_forward.13} parent=15 // pred_check_branch
          %134 = sbr.rel (%p132) target = $region20
        $region19: #{encoder_seq_gru_forward.13} parent=15 // pred_region
          %p135 = scmp.lt.s32.totalorder %s14, 7
          %s136 = scalar_select %p135, %s14, 7
          %s137 = smul.addr %s136, 2
          %s138 = scalar_lea.vmem %s0, %s137
        $region20: #{encoder_seq_gru_forward.13} parent=15 // pred_fallthru
          _
        // Predicated region
        $region21: #{encoder_seq_gru_forward.13} parent=15 // pred_check
          %p139 = pneg %p60
        $region22: #{encoder_seq_gru_forward.13} parent=15 // pred_check_branch
          %141 = sbr.rel (%p139) target = $region24
        $region23: #{encoder_seq_gru_forward.13} parent=15 // pred_region
          %p142 = scmp.lt.s32.totalorder %s14, 7
          %s143 = scalar_select %p142, %s14, 7
          %s144 = smul.addr %s143, 2
          %s145 = scalar_lea.vmem %s1, %s144
        $region24: #{encoder_seq_gru_forward.13} parent=15 // pred_fallthru
          _
      $region16: #{encoder_seq_gru_forward.13} parent=5 // pred_fallthru
        _
      %p146 = scmp.le.s32.totalorder 1, %s14
      %p147 = scmp.lt.s32.totalorder %s14, 9
      %p148 = pnand %p146, %p147
      %p149 = pneg %p148
      // Predicated region
      $region25: #{encoder_seq_gru_forward.13} parent=5 // pred_check
        _
      $region26: #{encoder_seq_gru_forward.13} parent=5 // pred_check_branch
        %151 = sbr.rel (%p148) target = $region28
      $region27: #{encoder_seq_gru_forward.13} parent=5 // pred_region
        %s152 = ssub.s32 %s14, 1
        %p153 = scmp.lt.s32.totalorder %s19, 7
        %s154 = scalar_select %p153, %s19, 7
        %s155 = smul.addr %s154, 2
        %s156 = scalar_lea.vmem %s0, %s155
        %p157 = pneg %p40
        %p158 = pneg %p37
        %p159 = scmp.lt.s32.totalorder %s19, 7
        %s160 = scalar_select %p159, %s19, 7
        %s161 = smul.addr %s160, 2
        %s162 = scalar_lea.vmem %s1, %s161
        %p163 = pneg %p66
        %p164 = pneg %p63
        %p165 = pneg %p92
        %p166 = pneg %p89
        %s167 = sand.u32 %s79, 1
        %s168 = scalar_lea.sflag [#allocation4], %s167
        %s169 = sand.u32 %s79, 1
        %s170 = smul.addr %s169, 2
        %s171 = scalar_lea.vmem [#allocation3], %s170
        %p172 = pneg %p113
        %p173 = pneg %p110
        %p174 = scmp.lt.s32.totalorder %s19, 7
        %s175 = scalar_select %p174, %s19, 7
        %s176 = smul.addr %s175, 2
        %s177 = scalar_lea.vmem %s0, %s176
        %p178 = scmp.lt.s32.totalorder %s19, 7
        %s179 = scalar_select %p178, %s19, 7
        %s180 = smul.addr %s179, 2
        %s181 = scalar_lea.vmem %s1, %s180
        %v182 = vld [vmem:[%s177] sm:$0x3]
        %v183 = vld [vmem:[%s181] sm:$0x3]
        %v184 = vadd.f32 %v182, %v183
        %vm185 = vcmask 254976
        %186 = vst.msk [vmem:[%s171] sm:$0x3] %vm185, %v184
        %p187 = scmp.eq.s32.totalorder %s19, 0
        // Predicated region
        $region29: #{encoder_seq_gru_forward.13} parent=27 // pred_check
          %p188 = pneg %p187
        $region30: #{encoder_seq_gru_forward.13} parent=27 // pred_check_branch
          %190 = sbr.rel (%p188) target = $region32
        $region31: #{encoder_seq_gru_forward.13} parent=27 // pred_region
          %191 = vst.msk [vmem:[#allocation2] sm:$0x3] %vm185, %v183
        $region32: #{encoder_seq_gru_forward.13} parent=27 // pred_fallthru
          _
        %p192 = scmp.eq.s32.totalorder %s19, 7
        // Predicated region
        $region33: #{encoder_seq_gru_forward.13} parent=27 // pred_check
          %p193 = pneg %p192
        $region34: #{encoder_seq_gru_forward.13} parent=27 // pred_check_branch
          %195 = sbr.rel (%p193) target = $region36
        $region35: #{encoder_seq_gru_forward.13} parent=27 // pred_region
          %v196 = vld [vmem:[#allocation2] sm:$0x3]
          %v197 = vadd.f32 %v196, %v182
          %198 = vst.msk [vmem:[#allocation5] sm:$0x3] %vm185, %v197
        $region36: #{encoder_seq_gru_forward.13} parent=27 // pred_fallthru
          _
        %s199 = sand.u32 %s79, 1
        %s200 = scalar_lea.sflag [#allocation4], %s199
        %s201 = sand.u32 %s79, 1
        %s202 = smul.addr %s201, 2
        %s203 = scalar_lea.vmem [#allocation3], %s202
        // Predicated region
        $region37: #{encoder_seq_gru_forward.13} parent=27 // pred_check
          %p204 = pneg %p89
        $region38: #{encoder_seq_gru_forward.13} parent=27 // pred_check_branch
          %206 = sbr.rel (%p204) target = $region40
        $region39: #{encoder_seq_gru_forward.13} parent=27 // pred_region
          %208 = vsyncadd %s200, 0
          %s209 = smul.addr %s19, 2
          %s210 = scalar_lea.hbm %s2, %s209
          %s212 = sshll.u32 %s203, 4
          %s213 = int_to_ptr.vmem [resolvable:$true] %s212
          %s214 = sshll.u32 %s210, 4
          %s215 = int_to_ptr.hbm [resolvable:$true] %s214
          %217 = dma.vmem_to_hbm [thread:$0]  %s213, 32, %s215, %s200
        $region40: #{encoder_seq_gru_forward.13} parent=27 // pred_fallthru
          _
        // Predicated region
        $region41: #{encoder_seq_gru_forward.13} parent=27 // pred_check
          %p218 = pneg %p110
        $region42: #{encoder_seq_gru_forward.13} parent=27 // pred_check_branch
          %220 = sbr.rel (%p218) target = $region44
        $region43: #{encoder_seq_gru_forward.13} parent=27 // pred_region
          %222 = vsyncadd [#allocation6], 0
          %s224 = sshll.u32 [#allocation5], 4
          %s225 = int_to_ptr.vmem [resolvable:$true] %s224
          %s226 = sshll.u32 %s3, 4
          %s227 = int_to_ptr.hbm [resolvable:$true] %s226
          %229 = dma.vmem_to_hbm [thread:$0]  %s225, 32, %s227, [#allocation6]
        $region44: #{encoder_seq_gru_forward.13} parent=27 // pred_fallthru
          _
        // Predicated region
        $region45: #{encoder_seq_gru_forward.13} parent=27 // pred_check
          %p230 = pneg %p110
        $region46: #{encoder_seq_gru_forward.13} parent=27 // pred_check_branch
          %232 = sbr.rel (%p230) target = $region48
        $region47: #{encoder_seq_gru_forward.13} parent=27 // pred_region
          %234 = dma.done [#allocation6], 32
        $region48: #{encoder_seq_gru_forward.13} parent=27 // pred_fallthru
          _
      $region28: #{encoder_seq_gru_forward.13} parent=5 // pred_fallthru
        _
      %p235 = scmp.le.s32.totalorder 2, %s14
      // Predicated region
      $region49: #{encoder_seq_gru_forward.13} parent=5 // pred_check
        %p236 = pneg %p235
      $region50: #{encoder_seq_gru_forward.13} parent=5 // pred_check_branch
        %238 = sbr.rel (%p236) target = $region52
      $region51: #{encoder_seq_gru_forward.13} parent=5 // pred_region
        %s239 = ssub.s32 %s14, 2
        // Predicated region
        $region53: #{encoder_seq_gru_forward.13} parent=51 // pred_check
          %p240 = pneg %p95
        $region54: #{encoder_seq_gru_forward.13} parent=51 // pred_check_branch
          %242 = sbr.rel (%p240) target = $region56
        $region55: #{encoder_seq_gru_forward.13} parent=51 // pred_region
          %s243 = sand.u32 %s80, 1
          %s244 = scalar_lea.sflag [#allocation4], %s243
          %s245 = sand.u32 %s80, 1
          %s246 = smul.addr %s245, 2
          %s247 = scalar_lea.vmem [#allocation3], %s246
          %249 = dma.done %s244, 32
        $region56: #{encoder_seq_gru_forward.13} parent=51 // pred_fallthru
          _
      $region52: #{encoder_seq_gru_forward.13} parent=5 // pred_fallthru
        _
    $region6: #{encoder_seq_gru_forward.13} parent=1 // loop_footer
      %s18 = sadd.s32 1, %s14
    $region7: #{encoder_seq_gru_forward.13} parent=1 // loop_footer_branch
      %13 = sbr.rel target = $region3
    $region8: #{encoder_seq_gru_forward.13} parent=1 // loop_exit
      _
    %250 = vsyncpa [#allocation4], 1
    %s251 = scalar_lea.sflag [#allocation4], 1
    %252 = vsyncpa %s251, 1
    %253 = vsyncpa [#allocation6], 1

// kernel: encoder_seq_gru_forward.7
$region0: #{encoder_seq_gru_forward.7}
  #allocation0 [shape = 'u32[]', space=smem, size = 0x4, offset = 0x4, fixed_abs, tag = 'smem constant byte address 0x4 - core index']
  #allocation1 [shape = 'u32[72,128]{1,0:T(1,128)}', space=vmem, size = 0x9000, scoped, tag = 'internal scratch']
  #allocation2 [shape = 'f32[16,128]{1,0:T(8,128)}', space=vmem, size = 0x2000, scoped, tag = 'scratch operand']
  %s0 = inlined_call_operand.vmem [shape: f32[16,128], index: 0, kind: input, shape index: {}]
  %s1 = inlined_call_operand.vmem [shape: f32[128,128], index: 1, kind: input, shape index: {}]
  %s2 = inlined_call_operand.vmem [shape: f32[1,128], index: 2, kind: input, shape index: {}]
  %s3 = inlined_call_operand.vmem [shape: f32[16,128], index: 3, kind: output, shape index: {}]
  %s4 = sld [smem:[#allocation0]]
  $region30: #{encoder_seq_gru_forward.7} parent=0
    _
  %s6 = ssub.s32 1, %s4
  %s7 = scalar_select 0, %s6, %s4
  // Predicated region
  $region2: #{encoder_seq_gru_forward.7} parent=0 // pred_check
    _
  $region3: #{encoder_seq_gru_forward.7} parent=0 // pred_check_branch
    %9 = sbr.rel (0) target = $region5
  $region4: #{encoder_seq_gru_forward.7} parent=0 // pred_region
    _
  $region5: #{encoder_seq_gru_forward.7} parent=0 // pred_fallthru
    _
  // Predicated region
  $region6: #{encoder_seq_gru_forward.7} parent=0 // pred_check
    _
  $region7: #{encoder_seq_gru_forward.7} parent=0 // pred_check_branch
    %11 = sbr.rel (0) target = $region9
  $region8: #{encoder_seq_gru_forward.7} parent=0 // pred_region
    _
  $region9: #{encoder_seq_gru_forward.7} parent=0 // pred_fallthru
    _
  // Predicated region
  $region10: #{encoder_seq_gru_forward.7} parent=0 // pred_check
    _
  $region11: #{encoder_seq_gru_forward.7} parent=0 // pred_check_branch
    %13 = sbr.rel (0) target = $region13
  $region12: #{encoder_seq_gru_forward.7} parent=0 // pred_region
    _
  $region13: #{encoder_seq_gru_forward.7} parent=0 // pred_fallthru
    _
  %p14 = scmp.eq.s32.totalorder 0, 0
  // Predicated region
  $region14: #{encoder_seq_gru_forward.7} parent=0 // pred_check
    %p15 = pneg %p14
  $region15: #{encoder_seq_gru_forward.7} parent=0 // pred_check_branch
    %17 = sbr.rel (%p15) target = $region17
  $region16: #{encoder_seq_gru_forward.7} parent=0 // pred_region
    %18 = vst [vmem:[#allocation2] sm:$0xff] 0.0
    %19 = vst [vmem:[#allocation2 + $0x8] sm:$0xff] 0.0
  $region17: #{encoder_seq_gru_forward.7} parent=0 // pred_fallthru
    _
  %v20 = vld [vmem:[#allocation2] sm:$0xff]
  %v21 = vld [vmem:[#allocation2 + $0x8] sm:$0xff]
  %v22 = vld [vmem:[%s0] sm:$0xff]
  %v23 = vld [vmem:[%s0 + $0x8] sm:$0xff]
  %v24 = vld [vmem:[%s1] sm:$0xff]
  %v25 = vld [vmem:[%s1 + $0x8] sm:$0xff]
  %v26 = vld [vmem:[%s1 + $0x10] sm:$0xff]
  %v27 = vld [vmem:[%s1 + $0x18] sm:$0xff]
  %v28 = vld [vmem:[%s1 + $0x20] sm:$0xff]
  %v29 = vld [vmem:[%s1 + $0x28] sm:$0xff]
  %v30 = vld [vmem:[%s1 + $0x30] sm:$0xff]
  %v31 = vld [vmem:[%s1 + $0x38] sm:$0xff]
  %v32 = vld [vmem:[%s1 + $0x40] sm:$0xff]
  %v33 = vld [vmem:[%s1 + $0x48] sm:$0xff]
  %v34 = vld [vmem:[%s1 + $0x50] sm:$0xff]
  %v35 = vld [vmem:[%s1 + $0x58] sm:$0xff]
  %v36 = vld [vmem:[%s1 + $0x60] sm:$0xff]
  %v37 = vld [vmem:[%s1 + $0x68] sm:$0xff]
  %v38 = vld [vmem:[%s1 + $0x70] sm:$0xff]
  %v39 = vld [vmem:[%s1 + $0x78] sm:$0xff]
  %40 = vmatpush.msra.mxu0 %v39
  %41 = vmatpush.msra.mxu0 %v38
  %42 = vmatpush.msra.mxu0 %v37
  %43 = vmatpush.msra.mxu0 %v36
  %44 = vmatpush.msra.mxu0 %v35
  %45 = vmatpush.msra.mxu0 %v34
  %46 = vmatpush.msra.mxu0 %v33
  %47 = vmatpush.msra.mxu0 %v32
  %48 = vmatpush.msra.mxu0 %v31
  %49 = vmatpush.msra.mxu0 %v30
  %50 = vmatpush.msra.mxu0 %v29
  %51 = vmatpush.msra.mxu0 %v28
  %52 = vmatpush.msra.mxu0 %v27
  %53 = vmatpush.msra.mxu0 %v26
  %54 = vmatpush.msra.mxu0 %v25
  %55 = vmatpush.msra.mxu0 %v24
  %56 = vmatmul.f32.gmra.mxu0 %v22
  %v57 = vpop.f32.mrf.mxu0
  %v58 = vadd.f32 0.0, %v57
  %59 = vmatmul.f32.gmra.mxu0 %v23
  %v60 = vpop.f32.mrf.mxu0
  %v61 = vadd.f32 0.0, %v60
  %62 = vdwg.mxu0
  %v63 = vadd.f32 %v20, %v58
  %v64 = vadd.f32 %v21, %v61
  %65 = vst [vmem:[#allocation2] sm:$0xff] %v63
  %66 = vst [vmem:[#allocation2 + $0x8] sm:$0xff] %v64
  // Predicated region
  $region18: #{encoder_seq_gru_forward.7} parent=0 // pred_check
    %p67 = pneg %p14
  $region19: #{encoder_seq_gru_forward.7} parent=0 // pred_check_branch
    %69 = sbr.rel (%p67) target = $region21
  $region20: #{encoder_seq_gru_forward.7} parent=0 // pred_region
    %v70 = vld [vmem:[#allocation2] sm:$0xff]
    %v71 = vld [vmem:[#allocation2 + $0x8] sm:$0xff]
    %v72 = vld [vmem:[%s2] sm:$0x1]
    %v74 = vperm.slane %v72, 0
    %v76 = vadd.f32 %v70, %v74
    %v77 = vadd.f32 %v71, %v74
    %78 = vst [vmem:[%s3] sm:$0xff] %v76
    %79 = vst [vmem:[%s3 + $0x8] sm:$0xff] %v77
  $region21: #{encoder_seq_gru_forward.7} parent=0 // pred_fallthru
    _
  // Predicated region
  $region22: #{encoder_seq_gru_forward.7} parent=0 // pred_check
    _
  $region23: #{encoder_seq_gru_forward.7} parent=0 // pred_check_branch
    %81 = sbr.rel (0) target = $region25
  $region24: #{encoder_seq_gru_forward.7} parent=0 // pred_region
    _
  $region25: #{encoder_seq_gru_forward.7} parent=0 // pred_fallthru
    _
  // Predicated region
  $region26: #{encoder_seq_gru_forward.7} parent=0 // pred_check
    _
  $region27: #{encoder_seq_gru_forward.7} parent=0 // pred_check_branch
    %83 = sbr.rel (0) target = $region29
  $region28: #{encoder_seq_gru_forward.7} parent=0 // pred_region
    _
  $region29: #{encoder_seq_gru_forward.7} parent=0 // pred_fallthru
    _

// kernel: encoder_seq_gru_forward.9
$region0: #{encoder_seq_gru_forward.9}
  #allocation0 [shape = 'u32[]', space=smem, size = 0x4, offset = 0x4, fixed_abs, tag = 'smem constant byte address 0x4 - core index']
  #allocation1 [shape = 'u32[72,128]{1,0:T(1,128)}', space=vmem, size = 0x9000, scoped, tag = 'internal scratch']
  #allocation2 [shape = 'f32[2,32]{1,0:T(2,128)}', space=vmem, size = 0x400, scoped, tag = 'scratch operand']
  #allocation3 [shape = 'f32[2,32]{1,0:T(2,128)}', space=vmem, size = 0x400, scoped, tag = 'scratch operand']
  %s0 = inlined_call_operand.vmem [shape: f32[8,2,96], index: 0, kind: input, shape index: {}]
  %s1 = inlined_call_operand.vmem [shape: f32[8,2,96], index: 1, kind: input, shape index: {}]
  %s2 = inlined_call_operand.vmem [shape: f32[8,2,1], index: 2, kind: input, shape index: {}, may-alias: {2,3}]
  %s3 = inlined_call_operand.vmem [shape: f32[8,2,1], index: 3, kind: input, shape index: {}, may-alias: {2,3}]
  %s4 = inlined_call_operand.vmem [shape: f32[32,96], index: 4, kind: input, shape index: {}]
  %s5 = inlined_call_operand.vmem [shape: f32[1,96], index: 5, kind: input, shape index: {}]
  %s6 = inlined_call_operand.vmem [shape: f32[32,96], index: 6, kind: input, shape index: {}]
  %s7 = inlined_call_operand.vmem [shape: f32[1,96], index: 7, kind: input, shape index: {}]
  %s8 = inlined_call_operand.vmem [shape: f32[2,32], index: 8, kind: input, shape index: {}, may-alias: {8,9}]
  %s9 = inlined_call_operand.vmem [shape: f32[2,32], index: 9, kind: input, shape index: {}, may-alias: {8,9}]
  %s10 = inlined_call_operand.vmem [shape: f32[8,2,32], index: 10, kind: output, shape index: {0}]
  %s11 = inlined_call_operand.vmem [shape: f32[8,2,32], index: 11, kind: output, shape index: {1}]
  %12 = xla_tuple %s10, %s11
  %s13 = sld [smem:[#allocation0]]
  $region85: #{encoder_seq_gru_forward.9} parent=0
    _
  %s15 = ssub.s32 1, %s13
  %s16 = scalar_select 0, %s15, %s13
  loop: start=0, step=1, limit=10
  $region2: #{encoder_seq_gru_forward.9} parent=0 // loop_pre_header
    _
  $region3: #{encoder_seq_gru_forward.9} parent=0 // loop_header
    %s18 = sphi 0, %s22
    %p19 = scmp.ge.s32.totalorder %s18, 10
    %s28 = sphi 0, %s30
    %s31 = sphi 0, %s28
    %s32 = sphi 0, %s31
    %s48 = sphi 0, %s32
    %s56 = sphi 0, %s58
    %s59 = sphi 0, %s56
    %s60 = sphi 0, %s59
    %s76 = sphi 0, %s60
    %s82 = sphi 0, %s84
    %s85 = sphi 0, %s82
    %s86 = sphi 0, %s85
    %s102 = sphi 0, %s86
    %s110 = sphi 0, %s112
    %s113 = sphi 0, %s110
    %s114 = sphi 0, %s113
    %s130 = sphi 0, %s114
    %s134 = sphi 0, %s134
    %s136 = sphi 0, %s134
    %s137 = sphi 0, %s136
    %s151 = sphi 0, %s137
    %s155 = sphi 0, %s155
    %s157 = sphi 0, %s155
    %s158 = sphi 0, %s157
    %s172 = sphi 0, %s158
    %s176 = sphi 0, %s176
    %s178 = sphi 0, %s176
    %s179 = sphi 0, %s178
    %s193 = sphi 0, %s179
    %s197 = sphi 0, %s197
    %s199 = sphi 0, %s197
    %s200 = sphi 0, %s199
    %s214 = sphi 0, %s200
    %s218 = sphi 0, %s218
    %s220 = sphi 0, %s218
    %s221 = sphi 0, %s220
    %s235 = sphi 0, %s221
    %s239 = sphi 0, %s239
    %s241 = sphi 0, %s239
    %s242 = sphi 0, %s241
    %s256 = sphi 0, %s242
    %s262 = sphi 0, %s264
    %s265 = sphi 0, %s262
    %s266 = sphi 0, %s265
    %s282 = sphi 0, %s266
    %s290 = sphi 0, %s292
    %s293 = sphi 0, %s290
    %s294 = sphi 0, %s293
    %s310 = sphi 0, %s294
  $region4: #{encoder_seq_gru_forward.9} parent=0 // loop_header_branch
    %21 = sbr.rel (%p19) target = $region8
  $region5: #{encoder_seq_gru_forward.9} parent=0 // loop_body
    %s23 = ssub.s32 %s18, 1
    %s24 = ssub.s32 %s18, 2
    %s25 = sadd.s32 %s18, 1
    %s26 = ssub.s32 %s18, %s25
    %p27 = scmp.eq.s32.totalorder %s26, 0
    %s29 = sadd.s32 %s28, 1
    %s30 = scalar_select %p27, %s28, %s29
    %p33 = pneg %p27
    %p34 = scmp.eq.s32.totalorder %s18, 7
    %p35 = por %p33, %p34
    %p36 = scmp.ne.s32.totalorder %s28, %s31
    %p37 = scmp.eq.s32.totalorder %s18, 0
    %p38 = por %p36, %p37
    %p39 = scmp.ne.s32.totalorder %s28, %s31
    %p40 = scmp.eq.s32.totalorder %s23, 7
    %p41 = por %p39, %p40
    %p42 = scmp.ne.s32.totalorder %s31, %s32
    %p43 = scmp.eq.s32.totalorder %s23, 0
    %p44 = por %p42, %p43
    %p45 = scmp.ne.s32.totalorder %s31, %s32
    %p46 = scmp.eq.s32.totalorder %s24, 7
    %p47 = por %p45, %p46
    %p49 = scmp.ne.s32.totalorder %s32, %s48
    %p50 = scmp.eq.s32.totalorder %s24, 0
    %p51 = por %p49, %p50
    %s52 = ssub.s32 7, %s18
    %s53 = ssub.s32 7, %s25
    %s54 = ssub.s32 %s52, %s53
    %p55 = scmp.eq.s32.totalorder %s54, 0
    %s57 = sadd.s32 %s56, 1
    %s58 = scalar_select %p55, %s56, %s57
    %p61 = pneg %p55
    %p62 = scmp.eq.s32.totalorder %s18, 7
    %p63 = por %p61, %p62
    %p64 = scmp.ne.s32.totalorder %s56, %s59
    %p65 = scmp.eq.s32.totalorder %s18, 0
    %p66 = por %p64, %p65
    %p67 = scmp.ne.s32.totalorder %s56, %s59
    %p68 = scmp.eq.s32.totalorder %s23, 7
    %p69 = por %p67, %p68
    %p70 = scmp.ne.s32.totalorder %s59, %s60
    %p71 = scmp.eq.s32.totalorder %s23, 0
    %p72 = por %p70, %p71
    %p73 = scmp.ne.s32.totalorder %s59, %s60
    %p74 = scmp.eq.s32.totalorder %s24, 7
    %p75 = por %p73, %p74
    %p77 = scmp.ne.s32.totalorder %s60, %s76
    %p78 = scmp.eq.s32.totalorder %s24, 0
    %p79 = por %p77, %p78
    %s80 = ssub.s32 %s18, %s25
    %p81 = scmp.eq.s32.totalorder %s80, 0
    %s83 = sadd.s32 %s82, 1
    %s84 = scalar_select %p81, %s82, %s83
    %p87 = pneg %p81
    %p88 = scmp.eq.s32.totalorder %s18, 7
    %p89 = por %p87, %p88
    %p90 = scmp.ne.s32.totalorder %s82, %s85
    %p91 = scmp.eq.s32.totalorder %s18, 0
    %p92 = por %p90, %p91
    %p93 = scmp.ne.s32.totalorder %s82, %s85
    %p94 = scmp.eq.s32.totalorder %s23, 7
    %p95 = por %p93, %p94
    %p96 = scmp.ne.s32.totalorder %s85, %s86
    %p97 = scmp.eq.s32.totalorder %s23, 0
    %p98 = por %p96, %p97
    %p99 = scmp.ne.s32.totalorder %s85, %s86
    %p100 = scmp.eq.s32.totalorder %s24, 7
    %p101 = por %p99, %p100
    %p103 = scmp.ne.s32.totalorder %s86, %s102
    %p104 = scmp.eq.s32.totalorder %s24, 0
    %p105 = por %p103, %p104
    %s106 = ssub.s32 7, %s18
    %s107 = ssub.s32 7, %s25
    %s108 = ssub.s32 %s106, %s107
    %p109 = scmp.eq.s32.totalorder %s108, 0
    %s111 = sadd.s32 %s110, 1
    %s112 = scalar_select %p109, %s110, %s111
    %p115 = pneg %p109
    %p116 = scmp.eq.s32.totalorder %s18, 7
    %p117 = por %p115, %p116
    %p118 = scmp.ne.s32.totalorder %s110, %s113
    %p119 = scmp.eq.s32.totalorder %s18, 0
    %p120 = por %p118, %p119
    %p121 = scmp.ne.s32.totalorder %s110, %s113
    %p122 = scmp.eq.s32.totalorder %s23, 7
    %p123 = por %p121, %p122
    %p124 = scmp.ne.s32.totalorder %s113, %s114
    %p125 = scmp.eq.s32.totalorder %s23, 0
    %p126 = por %p124, %p125
    %p127 = scmp.ne.s32.totalorder %s113, %s114
    %p128 = scmp.eq.s32.totalorder %s24, 7
    %p129 = por %p127, %p128
    %p131 = scmp.ne.s32.totalorder %s114, %s130
    %p132 = scmp.eq.s32.totalorder %s24, 0
    %p133 = por %p131, %p132
    %s135 = sadd.s32 %s134, 1
    %p138 = scmp.eq.s32.totalorder %s18, 7
    %p139 = scmp.ne.s32.totalorder %s134, %s136
    %p140 = scmp.eq.s32.totalorder %s18, 0
    %p141 = por %p139, %p140
    %p142 = scmp.ne.s32.totalorder %s134, %s136
    %p143 = scmp.eq.s32.totalorder %s23, 7
    %p144 = por %p142, %p143
    %p145 = scmp.ne.s32.totalorder %s136, %s137
    %p146 = scmp.eq.s32.totalorder %s23, 0
    %p147 = por %p145, %p146
    %p148 = scmp.ne.s32.totalorder %s136, %s137
    %p149 = scmp.eq.s32.totalorder %s24, 7
    %p150 = por %p148, %p149
    %p152 = scmp.ne.s32.totalorder %s137, %s151
    %p153 = scmp.eq.s32.totalorder %s24, 0
    %p154 = por %p152, %p153
    %s156 = sadd.s32 %s155, 1
    %p159 = scmp.eq.s32.totalorder %s18, 7
    %p160 = scmp.ne.s32.totalorder %s155, %s157
    %p161 = scmp.eq.s32.totalorder %s18, 0
    %p162 = por %p160, %p161
    %p163 = scmp.ne.s32.totalorder %s155, %s157
    %p164 = scmp.eq.s32.totalorder %s23, 7
    %p165 = por %p163, %p164
    %p166 = scmp.ne.s32.totalorder %s157, %s158
    %p167 = scmp.eq.s32.totalorder %s23, 0
    %p168 = por %p166, %p167
    %p169 = scmp.ne.s32.totalorder %s157, %s158
    %p170 = scmp.eq.s32.totalorder %s24, 7
    %p171 = por %p169, %p170
    %p173 = scmp.ne.s32.totalorder %s158, %s172
    %p174 = scmp.eq.s32.totalorder %s24, 0
    %p175 = por %p173, %p174
    %s177 = sadd.s32 %s176, 1
    %p180 = scmp.eq.s32.totalorder %s18, 7
    %p181 = scmp.ne.s32.totalorder %s176, %s178
    %p182 = scmp.eq.s32.totalorder %s18, 0
    %p183 = por %p181, %p182
    %p184 = scmp.ne.s32.totalorder %s176, %s178
    %p185 = scmp.eq.s32.totalorder %s23, 7
    %p186 = por %p184, %p185
    %p187 = scmp.ne.s32.totalorder %s178, %s179
    %p188 = scmp.eq.s32.totalorder %s23, 0
    %p189 = por %p187, %p188
    %p190 = scmp.ne.s32.totalorder %s178, %s179
    %p191 = scmp.eq.s32.totalorder %s24, 7
    %p192 = por %p190, %p191
    %p194 = scmp.ne.s32.totalorder %s179, %s193
    %p195 = scmp.eq.s32.totalorder %s24, 0
    %p196 = por %p194, %p195
    %s198 = sadd.s32 %s197, 1
    %p201 = scmp.eq.s32.totalorder %s18, 7
    %p202 = scmp.ne.s32.totalorder %s197, %s199
    %p203 = scmp.eq.s32.totalorder %s18, 0
    %p204 = por %p202, %p203
    %p205 = scmp.ne.s32.totalorder %s197, %s199
    %p206 = scmp.eq.s32.totalorder %s23, 7
    %p207 = por %p205, %p206
    %p208 = scmp.ne.s32.totalorder %s199, %s200
    %p209 = scmp.eq.s32.totalorder %s23, 0
    %p210 = por %p208, %p209
    %p211 = scmp.ne.s32.totalorder %s199, %s200
    %p212 = scmp.eq.s32.totalorder %s24, 7
    %p213 = por %p211, %p212
    %p215 = scmp.ne.s32.totalorder %s200, %s214
    %p216 = scmp.eq.s32.totalorder %s24, 0
    %p217 = por %p215, %p216
    %s219 = sadd.s32 %s218, 1
    %p222 = scmp.eq.s32.totalorder %s18, 7
    %p223 = scmp.ne.s32.totalorder %s218, %s220
    %p224 = scmp.eq.s32.totalorder %s18, 0
    %p225 = por %p223, %p224
    %p226 = scmp.ne.s32.totalorder %s218, %s220
    %p227 = scmp.eq.s32.totalorder %s23, 7
    %p228 = por %p226, %p227
    %p229 = scmp.ne.s32.totalorder %s220, %s221
    %p230 = scmp.eq.s32.totalorder %s23, 0
    %p231 = por %p229, %p230
    %p232 = scmp.ne.s32.totalorder %s220, %s221
    %p233 = scmp.eq.s32.totalorder %s24, 7
    %p234 = por %p232, %p233
    %p236 = scmp.ne.s32.totalorder %s221, %s235
    %p237 = scmp.eq.s32.totalorder %s24, 0
    %p238 = por %p236, %p237
    %s240 = sadd.s32 %s239, 1
    %p243 = scmp.eq.s32.totalorder %s18, 7
    %p244 = scmp.ne.s32.totalorder %s239, %s241
    %p245 = scmp.eq.s32.totalorder %s18, 0
    %p246 = por %p244, %p245
    %p247 = scmp.ne.s32.totalorder %s239, %s241
    %p248 = scmp.eq.s32.totalorder %s23, 7
    %p249 = por %p247, %p248
    %p250 = scmp.ne.s32.totalorder %s241, %s242
    %p251 = scmp.eq.s32.totalorder %s23, 0
    %p252 = por %p250, %p251
    %p253 = scmp.ne.s32.totalorder %s241, %s242
    %p254 = scmp.eq.s32.totalorder %s24, 7
    %p255 = por %p253, %p254
    %p257 = scmp.ne.s32.totalorder %s242, %s256
    %p258 = scmp.eq.s32.totalorder %s24, 0
    %p259 = por %p257, %p258
    %s260 = ssub.s32 %s18, %s25
    %p261 = scmp.eq.s32.totalorder %s260, 0
    %s263 = sadd.s32 %s262, 1
    %s264 = scalar_select %p261, %s262, %s263
    %p267 = pneg %p261
    %p268 = scmp.eq.s32.totalorder %s18, 7
    %p269 = por %p267, %p268
    %p270 = scmp.ne.s32.totalorder %s262, %s265
    %p271 = scmp.eq.s32.totalorder %s18, 0
    %p272 = por %p270, %p271
    %p273 = scmp.ne.s32.totalorder %s262, %s265
    %p274 = scmp.eq.s32.totalorder %s23, 7
    %p275 = por %p273, %p274
    %p276 = scmp.ne.s32.totalorder %s265, %s266
    %p277 = scmp.eq.s32.totalorder %s23, 0
    %p278 = por %p276, %p277
    %p279 = scmp.ne.s32.totalorder %s265, %s266
    %p280 = scmp.eq.s32.totalorder %s24, 7
    %p281 = por %p279, %p280
    %p283 = scmp.ne.s32.totalorder %s266, %s282
    %p284 = scmp.eq.s32.totalorder %s24, 0
    %p285 = por %p283, %p284
    %s286 = ssub.s32 7, %s18
    %s287 = ssub.s32 7, %s25
    %s288 = ssub.s32 %s286, %s287
    %p289 = scmp.eq.s32.totalorder %s288, 0
    %s291 = sadd.s32 %s290, 1
    %s292 = scalar_select %p289, %s290, %s291
    %p295 = pneg %p289
    %p296 = scmp.eq.s32.totalorder %s18, 7
    %p297 = por %p295, %p296
    %p298 = scmp.ne.s32.totalorder %s290, %s293
    %p299 = scmp.eq.s32.totalorder %s18, 0
    %p300 = por %p298, %p299
    %p301 = scmp.ne.s32.totalorder %s290, %s293
    %p302 = scmp.eq.s32.totalorder %s23, 7
    %p303 = por %p301, %p302
    %p304 = scmp.ne.s32.totalorder %s293, %s294
    %p305 = scmp.eq.s32.totalorder %s23, 0
    %p306 = por %p304, %p305
    %p307 = scmp.ne.s32.totalorder %s293, %s294
    %p308 = scmp.eq.s32.totalorder %s24, 7
    %p309 = por %p307, %p308
    %p311 = scmp.ne.s32.totalorder %s294, %s310
    %p312 = scmp.eq.s32.totalorder %s24, 0
    %p313 = por %p311, %p312
    %p314 = scmp.le.s32.totalorder 1, %s18
    %p315 = scmp.lt.s32.totalorder %s18, 9
    %p316 = pnand %p314, %p315
    %p317 = pneg %p316
    // Predicated region
    $region9: #{encoder_seq_gru_forward.9} parent=5 // pred_check
      _
    $region10: #{encoder_seq_gru_forward.9} parent=5 // pred_check_branch
      %319 = sbr.rel (%p316) target = $region12
    $region11: #{encoder_seq_gru_forward.9} parent=5 // pred_region
      %s320 = ssub.s32 %s18, 1
      // Predicated region
      $region13: #{encoder_seq_gru_forward.9} parent=11 // pred_check
        %p321 = pneg %p147
      $region14: #{encoder_seq_gru_forward.9} parent=11 // pred_check_branch
        %323 = sbr.rel (%p321) target = $region16
      $region15: #{encoder_seq_gru_forward.9} parent=11 // pred_region
        _
      $region16: #{encoder_seq_gru_forward.9} parent=11 // pred_fallthru
        _
      // Predicated region
      $region17: #{encoder_seq_gru_forward.9} parent=11 // pred_check
        %p324 = pneg %p168
      $region18: #{encoder_seq_gru_forward.9} parent=11 // pred_check_branch
        %326 = sbr.rel (%p324) target = $region20
      $region19: #{encoder_seq_gru_forward.9} parent=11 // pred_region
        _
      $region20: #{encoder_seq_gru_forward.9} parent=11 // pred_fallthru
        _
      // Predicated region
      $region21: #{encoder_seq_gru_forward.9} parent=11 // pred_check
        %p327 = pneg %p189
      $region22: #{encoder_seq_gru_forward.9} parent=11 // pred_check_branch
        %329 = sbr.rel (%p327) target = $region24
      $region23: #{encoder_seq_gru_forward.9} parent=11 // pred_region
        _
      $region24: #{encoder_seq_gru_forward.9} parent=11 // pred_fallthru
        _
      // Predicated region
      $region25: #{encoder_seq_gru_forward.9} parent=11 // pred_check
        %p330 = pneg %p210
      $region26: #{encoder_seq_gru_forward.9} parent=11 // pred_check_branch
        %332 = sbr.rel (%p330) target = $region28
      $region27: #{encoder_seq_gru_forward.9} parent=11 // pred_region
        _
      $region28: #{encoder_seq_gru_forward.9} parent=11 // pred_fallthru
        _
      // Predicated region
      $region29: #{encoder_seq_gru_forward.9} parent=11 // pred_check
        %p333 = pneg %p231
      $region30: #{encoder_seq_gru_forward.9} parent=11 // pred_check_branch
        %335 = sbr.rel (%p333) target = $region32
      $region31: #{encoder_seq_gru_forward.9} parent=11 // pred_region
        _
      $region32: #{encoder_seq_gru_forward.9} parent=11 // pred_fallthru
        _
      // Predicated region
      $region33: #{encoder_seq_gru_forward.9} parent=11 // pred_check
        %p336 = pneg %p252
      $region34: #{encoder_seq_gru_forward.9} parent=11 // pred_check_branch
        %338 = sbr.rel (%p336) target = $region36
      $region35: #{encoder_seq_gru_forward.9} parent=11 // pred_region
        _
      $region36: #{encoder_seq_gru_forward.9} parent=11 // pred_fallthru
        _
    $region12: #{encoder_seq_gru_forward.9} parent=5 // pred_fallthru
      _
    %p339 = scmp.lt.s32.totalorder %s18, 8
    // Predicated region
    $region37: #{encoder_seq_gru_forward.9} parent=5 // pred_check
      %p340 = pneg %p339
    $region38: #{encoder_seq_gru_forward.9} parent=5 // pred_check_branch
      %342 = sbr.rel (%p340) target = $region40
    $region39: #{encoder_seq_gru_forward.9} parent=5 // pred_region
      // Predicated region
      $region41: #{encoder_seq_gru_forward.9} parent=39 // pred_check
        %p343 = pneg %p38
      $region42: #{encoder_seq_gru_forward.9} parent=39 // pred_check_branch
        %345 = sbr.rel (%p343) target = $region44
      $region43: #{encoder_seq_gru_forward.9} parent=39 // pred_region
        %p346 = scmp.lt.s32.totalorder %s18, 7
        %s347 = scalar_select %p346, %s18, 7
        %s348 = smul.addr %s347, 2
        %s349 = scalar_lea.vmem %s0, %s348
      $region44: #{encoder_seq_gru_forward.9} parent=39 // pred_fallthru
        _
      // Predicated region
      $region45: #{encoder_seq_gru_forward.9} parent=39 // pred_check
        %p350 = pneg %p66
      $region46: #{encoder_seq_gru_forward.9} parent=39 // pred_check_branch
        %352 = sbr.rel (%p350) target = $region48
      $region47: #{encoder_seq_gru_forward.9} parent=39 // pred_region
        %s353 = ssub.s32 7, %s18
        %p354 = scmp.lt.s32.totalorder %s353, 7
        %s355 = scalar_select %p354, %s353, 7
        %s356 = smul.addr %s355, 2
        %s357 = scalar_lea.vmem %s1, %s356
        %s358 = ssub.s32 7, %s18
      $region48: #{encoder_seq_gru_forward.9} parent=39 // pred_fallthru
        _
      // Predicated region
      $region49: #{encoder_seq_gru_forward.9} parent=39 // pred_check
        %p359 = pneg %p92
      $region50: #{encoder_seq_gru_forward.9} parent=39 // pred_check_branch
        %361 = sbr.rel (%p359) target = $region52
      $region51: #{encoder_seq_gru_forward.9} parent=39 // pred_region
        %p362 = scmp.lt.s32.totalorder %s18, 7
        %s363 = scalar_select %p362, %s18, 7
        %s364 = smul.addr %s363, 2
        %s365 = scalar_lea.vmem %s2, %s364
      $region52: #{encoder_seq_gru_forward.9} parent=39 // pred_fallthru
        _
      // Predicated region
      $region53: #{encoder_seq_gru_forward.9} parent=39 // pred_check
        %p366 = pneg %p120
      $region54: #{encoder_seq_gru_forward.9} parent=39 // pred_check_branch
        %368 = sbr.rel (%p366) target = $region56
      $region55: #{encoder_seq_gru_forward.9} parent=39 // pred_region
        %s369 = ssub.s32 7, %s18
        %p370 = scmp.lt.s32.totalorder %s369, 7
        %s371 = scalar_select %p370, %s369, 7
        %s372 = smul.addr %s371, 2
        %s373 = scalar_lea.vmem %s3, %s372
        %s374 = ssub.s32 7, %s18
      $region56: #{encoder_seq_gru_forward.9} parent=39 // pred_fallthru
        _
    $region40: #{encoder_seq_gru_forward.9} parent=5 // pred_fallthru
      _
    %p375 = scmp.le.s32.totalorder 1, %s18
    %p376 = scmp.lt.s32.totalorder %s18, 9
    %p377 = pnand %p375, %p376
    %p378 = pneg %p377
    // Predicated region
    $region57: #{encoder_seq_gru_forward.9} parent=5 // pred_check
      _
    $region58: #{encoder_seq_gru_forward.9} parent=5 // pred_check_branch
      %380 = sbr.rel (%p377) target = $region60
    $region59: #{encoder_seq_gru_forward.9} parent=5 // pred_region
      %s381 = ssub.s32 %s18, 1
      %p382 = scmp.lt.s32.totalorder %s23, 7
      %s383 = scalar_select %p382, %s23, 7
      %s384 = smul.addr %s383, 2
      %s385 = scalar_lea.vmem %s0, %s384
      %p386 = pneg %p44
      %p387 = pneg %p41
      %s388 = ssub.s32 7, %s23
      %p389 = scmp.lt.s32.totalorder %s388, 7
      %s390 = scalar_select %p389, %s388, 7
      %s391 = smul.addr %s390, 2
      %s392 = scalar_lea.vmem %s1, %s391
      %p393 = pneg %p72
      %p394 = pneg %p69
      %p395 = scmp.lt.s32.totalorder %s23, 7
      %s396 = scalar_select %p395, %s23, 7
      %s397 = smul.addr %s396, 2
      %s398 = scalar_lea.vmem %s2, %s397
      %p399 = pneg %p98
      %p400 = pneg %p95
      %s401 = ssub.s32 7, %s23
      %p402 = scmp.lt.s32.totalorder %s401, 7
      %s403 = scalar_select %p402, %s401, 7
      %s404 = smul.addr %s403, 2
      %s405 = scalar_lea.vmem %s3, %s404
      %p406 = pneg %p126
      %p407 = pneg %p123
      %p408 = pneg %p147
      %p409 = pneg %p144
      %p410 = pneg %p168
      %p411 = pneg %p165
      %p412 = pneg %p189
      %p413 = pneg %p186
      %p414 = pneg %p210
      %p415 = pneg %p207
      %p416 = pneg %p231
      %p417 = pneg %p228
      %p418 = pneg %p252
      %p419 = pneg %p249
      %p420 = pneg %p278
      %p421 = pneg %p275
      %p422 = scmp.lt.s32.totalorder %s23, 7
      %s423 = scalar_select %p422, %s23, 7
      %s424 = smul.addr %s423, 2
      %s425 = scalar_lea.vmem %s10, %s424
      %p426 = pneg %p306
      %p427 = pneg %p303
      %s428 = ssub.s32 7, %s23
      %p429 = scmp.lt.s32.totalorder %s428, 7
      %s430 = scalar_select %p429, %s428, 7
      %s431 = smul.addr %s430, 2
      %s432 = scalar_lea.vmem %s11, %s431
      %p433 = scmp.lt.s32.totalorder %s23, 7
      %s434 = scalar_select %p433, %s23, 7
      %s435 = smul.addr %s434, 2
      %s436 = scalar_lea.vmem %s0, %s435
      %s437 = ssub.s32 7, %s23
      %p438 = scmp.lt.s32.totalorder %s437, 7
      %s439 = scalar_select %p438, %s437, 7
      %s440 = smul.addr %s439, 2
      %s441 = scalar_lea.vmem %s1, %s440
      %s442 = ssub.s32 7, %s23
      %p443 = scmp.lt.s32.totalorder %s23, 7
      %s444 = scalar_select %p443, %s23, 7
      %s445 = smul.addr %s444, 2
      %s446 = scalar_lea.vmem %s2, %s445
      %s447 = ssub.s32 7, %s23
      %p448 = scmp.lt.s32.totalorder %s447, 7
      %s449 = scalar_select %p448, %s447, 7
      %s450 = smul.addr %s449, 2
      %s451 = scalar_lea.vmem %s3, %s450
      %s452 = ssub.s32 7, %s23
      %p453 = scmp.lt.s32.totalorder %s23, 7
      %s454 = scalar_select %p453, %s23, 7
      %s455 = smul.addr %s454, 2
      %s456 = scalar_lea.vmem %s10, %s455
      %s457 = ssub.s32 7, %s23
      %p458 = scmp.lt.s32.totalorder %s457, 7
      %s459 = scalar_select %p458, %s457, 7
      %s460 = smul.addr %s459, 2
      %s461 = scalar_lea.vmem %s11, %s460
      %s462 = ssub.s32 7, %s23
      %p463 = scmp.eq.s32.totalorder %s23, 0
      // Predicated region
      $region61: #{encoder_seq_gru_forward.9} parent=59 // pred_check
        %p464 = pneg %p463
      $region62: #{encoder_seq_gru_forward.9} parent=59 // pred_check_branch
        %466 = sbr.rel (%p464) target = $region64
      $region63: #{encoder_seq_gru_forward.9} parent=59 // pred_region
        %v467 = vld [vmem:[%s8] sm:$0x3]
        %vm468 = vcmask 254976
        %469 = vst.msk [vmem:[#allocation2] sm:$0x3] %vm468, %v467
        %v470 = vld [vmem:[%s9] sm:$0x3]
        %471 = vst.msk [vmem:[#allocation3] sm:$0x3] %vm468, %v470
      $region64: #{encoder_seq_gru_forward.9} parent=59 // pred_fallthru
        _
      %v472 = vld [vmem:[#allocation2] sm:$0x3]
      %v473 = vld [vmem:[%s4] sm:$0xff]
      %v474 = vld [vmem:[%s4 + $0x8] sm:$0xff]
      %v475 = vld [vmem:[%s4 + $0x10] sm:$0xff]
      %v476 = vld [vmem:[%s4 + $0x18] sm:$0xff]
      %v477 = vld [vmem:[%s5] sm:$0x1]
      %v479 = vperm.slane %v477, 0
      %vm481 = vcmask 261120
      %v483 = vsel %vm481, %v472, 0
      %485 = vmatpush.msra.mxu0 0.0
      %486 = vmatpush.msra.mxu0 0.0
      %487 = vmatpush.msra.mxu0 0.0
      %488 = vmatpush.msra.mxu0 0.0
      %489 = vmatpush.msra.mxu0 0.0
      %490 = vmatpush.msra.mxu0 0.0
      %491 = vmatpush.msra.mxu0 0.0
      %492 = vmatpush.msra.mxu0 0.0
      %493 = vmatpush.msra.mxu0 0.0
      %494 = vmatpush.msra.mxu0 0.0
      %495 = vmatpush.msra.mxu0 0.0
      %496 = vmatpush.msra.mxu0 0.0
      %497 = vmatpush.msra.mxu0 %v476
      %498 = vmatpush.msra.mxu0 %v475
      %499 = vmatpush.msra.mxu0 %v474
      %500 = vmatpush.msra.mxu0 %v473
      %501 = vmatmul.f32.gmra.mxu0 %v483
      %v502 = vpop.f32.mrf.mxu0
      %v503 = vadd.f32 %v479, %v502
      %504 = vdwg.mxu0
      %v505 = vld [vmem:[%s436] sm:$0x3]
      %v506 = vld [vmem:[%s446] sm:$0x3]
      %v507 = vadd.f32 %v505, %v503
      %v508 = vxor.u32 %v507, 2147483648
      %v509 = vmul.f32 %v508, 1.442695
      %v510 = vpow.pop %v509
      %v511 = vadd.f32 %v510, 1.0
      %v512 = vrcp.pop %v511
      %v513 = vmul.f32 %v511, %v512
      %v514 = vsub.f32 1.0, %v513
      %v515 = vmul.f32 %v512, %v514
      %v516 = vadd.f32 %v512, %v515
      %vm517 = vweird.f32 %v511
      %vm518 = vweird.f32 %v512
      %vm519 = vmor %vm517, %vm518
      %v520 = vsel %vm519, %v512, %v516
      %v521 = vand.u32 2147483647, %v511
      %vm522 = vcmp.eq.f32.partialorder %v521, 8.507059e+37
      %v523 = vand.u32 %v511, 2147483648
      %v524 = vor.u32 1.1754944e-38, %v523
      %v525 = vsel %vm522, %v524, %v520
      %v526 = vmul.f32 1.0, %v525
      %528 = vrot.lane.b32.xlu0 %v503, 64
      %v529 = vpop.permute.xlu0 %528
      %v531 = vmul.f32 %v526, %v529
      %533 = vrot.lane.b32.xlu0 %v531, 64
      %v534 = vpop.permute.xlu0 %533
      %v536 = vadd.f32 %v505, %v534
      %v537 = vtanh.pop %v536
      %v538 = vsub.f32 1.0, %v526
      %540 = vrot.lane.b32.xlu0 %v537, 96
      %v541 = vpop.permute.xlu0 %540
      %v543 = vmul.f32 %v538, %v541
      %544 = vrot.lane.b32.xlu0 %v472, 32
      %v545 = vpop.permute.xlu0 %544
      %v547 = vmul.f32 %v526, %v545
      %v548 = vadd.f32 %v543, %v547
      %550 = vset.pattern.permute.xlu0 0
      %551 = vperm.xlu0 %550, %v506
      %v552 = vpop.permute.xlu0 %551
      %v554 = vmul.f32 %v552, %v548
      %v555 = vsub.f32 1.0, %v506
      %557 = vset.pattern.permute.xlu0 0
      %558 = vperm.xlu0 %557, %v555
      %v559 = vpop.permute.xlu0 %558
      %v561 = vmul.f32 %v559, %v472
      %563 = vrot.lane.b32.xlu0 %v561, 32
      %v564 = vpop.permute.xlu0 %563
      %v566 = vadd.f32 %v554, %v564
      %v567 = vld [vmem:[#allocation3] sm:$0x3]
      %v568 = vld [vmem:[%s6] sm:$0xff]
      %v569 = vld [vmem:[%s6 + $0x8] sm:$0xff]
      %v570 = vld [vmem:[%s6 + $0x10] sm:$0xff]
      %v571 = vld [vmem:[%s6 + $0x18] sm:$0xff]
      %v572 = vld [vmem:[%s7] sm:$0x1]
      %v574 = vperm.slane %v572, 0
      %v577 = vsel %vm481, %v567, 0
      %579 = vmatpush.msra.mxu0 0.0
      %580 = vmatpush.msra.mxu0 0.0
      %581 = vmatpush.msra.mxu0 0.0
      %582 = vmatpush.msra.mxu0 0.0
      %583 = vmatpush.msra.mxu0 0.0
      %584 = vmatpush.msra.mxu0 0.0
      %585 = vmatpush.msra.mxu0 0.0
      %586 = vmatpush.msra.mxu0 0.0
      %587 = vmatpush.msra.mxu0 0.0
      %588 = vmatpush.msra.mxu0 0.0
      %589 = vmatpush.msra.mxu0 0.0
      %590 = vmatpush.msra.mxu0 0.0
      %591 = vmatpush.msra.mxu0 %v571
      %592 = vmatpush.msra.mxu0 %v570
      %593 = vmatpush.msra.mxu0 %v569
      %594 = vmatpush.msra.mxu0 %v568
      %595 = vmatmul.f32.gmra.mxu0 %v577
      %v596 = vpop.f32.mrf.mxu0
      %v597 = vadd.f32 %v574, %v596
      %598 = vdwg.mxu0
      %v599 = vld [vmem:[%s441] sm:$0x3]
      %v600 = vld [vmem:[%s451] sm:$0x3]
      %v601 = vadd.f32 %v599, %v597
      %v602 = vxor.u32 %v601, 2147483648
      %v603 = vmul.f32 %v602, 1.442695
      %v604 = vpow.pop %v603
      %v605 = vadd.f32 %v604, 1.0
      %v606 = vrcp.pop %v605
      %v607 = vmul.f32 %v605, %v606
      %v608 = vsub.f32 1.0, %v607
      %v609 = vmul.f32 %v606, %v608
      %v610 = vadd.f32 %v606, %v609
      %vm611 = vweird.f32 %v605
      %vm612 = vweird.f32 %v606
      %vm613 = vmor %vm611, %vm612
      %v614 = vsel %vm613, %v606, %v610
      %v615 = vand.u32 2147483647, %v605
      %vm616 = vcmp.eq.f32.partialorder %v615, 8.507059e+37
      %v617 = vand.u32 %v605, 2147483648
      %v618 = vor.u32 1.1754944e-38, %v617
      %v619 = vsel %vm616, %v618, %v614
      %v620 = vmul.f32 1.0, %v619
      %622 = vrot.lane.b32.xlu0 %v597, 64
      %v623 = vpop.permute.xlu0 %622
      %v625 = vmul.f32 %v620, %v623
      %627 = vrot.lane.b32.xlu0 %v625, 64
      %v628 = vpop.permute.xlu0 %627
      %v630 = vadd.f32 %v599, %v628
      %v631 = vtanh.pop %v630
      %v632 = vsub.f32 1.0, %v620
      %634 = vrot.lane.b32.xlu0 %v631, 96
      %v635 = vpop.permute.xlu0 %634
      %v637 = vmul.f32 %v632, %v635
      %638 = vrot.lane.b32.xlu0 %v567, 32
      %v639 = vpop.permute.xlu0 %638
      %v641 = vmul.f32 %v620, %v639
      %v642 = vadd.f32 %v637, %v641
      %644 = vset.pattern.permute.xlu0 0
      %645 = vperm.xlu0 %644, %v600
      %v646 = vpop.permute.xlu0 %645
      %v648 = vmul.f32 %v646, %v642
      %v649 = vsub.f32 1.0, %v600
      %651 = vset.pattern.permute.xlu0 0
      %652 = vperm.xlu0 %651, %v649
      %v653 = vpop.permute.xlu0 %652
      %v655 = vmul.f32 %v653, %v567
      %657 = vrot.lane.b32.xlu0 %v655, 32
      %v658 = vpop.permute.xlu0 %657
      %v660 = vadd.f32 %v648, %v658
      %662 = vrot.lane.b32.xlu0 %v566, 96
      %v663 = vpop.permute.xlu0 %662
      %vm665 = vcmask 254976
      %666 = vst.msk [vmem:[#allocation2] sm:$0x3] %vm665, %v663
      %668 = vrot.lane.b32.xlu0 %v660, 96
      %v669 = vpop.permute.xlu0 %668
      %671 = vst.msk [vmem:[#allocation3] sm:$0x3] %vm665, %v669
      %673 = vrot.lane.b32.xlu0 %v554, 96
      %v674 = vpop.permute.xlu0 %673
      %676 = vst.msk [vmem:[%s456] sm:$0x3] %vm665, %v674
      %678 = vrot.lane.b32.xlu0 %v648, 96
      %v679 = vpop.permute.xlu0 %678
      %681 = vst.msk [vmem:[%s461] sm:$0x3] %vm665, %v679
      %p682 = scmp.lt.s32.totalorder %s23, 7
      %s683 = scalar_select %p682, %s23, 7
      %s684 = smul.addr %s683, 2
      %s685 = scalar_lea.vmem %s10, %s684
      %s686 = ssub.s32 7, %s23
      %p687 = scmp.lt.s32.totalorder %s686, 7
      %s688 = scalar_select %p687, %s686, 7
      %s689 = smul.addr %s688, 2
      %s690 = scalar_lea.vmem %s11, %s689
      // Predicated region
      $region65: #{encoder_seq_gru_forward.9} parent=59 // pred_check
        %p691 = pneg %p275
      $region66: #{encoder_seq_gru_forward.9} parent=59 // pred_check_branch
        %693 = sbr.rel (%p691) target = $region68
      $region67: #{encoder_seq_gru_forward.9} parent=59 // pred_region
        _
      $region68: #{encoder_seq_gru_forward.9} parent=59 // pred_fallthru
        _
      // Predicated region
      $region69: #{encoder_seq_gru_forward.9} parent=59 // pred_check
        %p694 = pneg %p303
      $region70: #{encoder_seq_gru_forward.9} parent=59 // pred_check_branch
        %696 = sbr.rel (%p694) target = $region72
      $region71: #{encoder_seq_gru_forward.9} parent=59 // pred_region
        %s697 = ssub.s32 7, %s23
      $region72: #{encoder_seq_gru_forward.9} parent=59 // pred_fallthru
        _
    $region60: #{encoder_seq_gru_forward.9} parent=5 // pred_fallthru
      _
    %p698 = scmp.le.s32.totalorder 2, %s18
    // Predicated region
    $region73: #{encoder_seq_gru_forward.9} parent=5 // pred_check
      %p699 = pneg %p698
    $region74: #{encoder_seq_gru_forward.9} parent=5 // pred_check_branch
      %701 = sbr.rel (%p699) target = $region76
    $region75: #{encoder_seq_gru_forward.9} parent=5 // pred_region
      %s702 = ssub.s32 %s18, 2
      // Predicated region
      $region77: #{encoder_seq_gru_forward.9} parent=75 // pred_check
        %p703 = pneg %p281
      $region78: #{encoder_seq_gru_forward.9} parent=75 // pred_check_branch
        %705 = sbr.rel (%p703) target = $region80
      $region79: #{encoder_seq_gru_forward.9} parent=75 // pred_region
        %p706 = scmp.lt.s32.totalorder %s24, 7
        %s707 = scalar_select %p706, %s24, 7
        %s708 = smul.addr %s707, 2
        %s709 = scalar_lea.vmem %s10, %s708
      $region80: #{encoder_seq_gru_forward.9} parent=75 // pred_fallthru
        _
      // Predicated region
      $region81: #{encoder_seq_gru_forward.9} parent=75 // pred_check
        %p710 = pneg %p309
      $region82: #{encoder_seq_gru_forward.9} parent=75 // pred_check_branch
        %712 = sbr.rel (%p710) target = $region84
      $region83: #{encoder_seq_gru_forward.9} parent=75 // pred_region
        %s713 = ssub.s32 7, %s24
        %p714 = scmp.lt.s32.totalorder %s713, 7
        %s715 = scalar_select %p714, %s713, 7
        %s716 = smul.addr %s715, 2
        %s717 = scalar_lea.vmem %s11, %s716
      $region84: #{encoder_seq_gru_forward.9} parent=75 // pred_fallthru
        _
    $region76: #{encoder_seq_gru_forward.9} parent=5 // pred_fallthru
      _
  $region6: #{encoder_seq_gru_forward.9} parent=0 // loop_footer
    %s22 = sadd.s32 1, %s18
  $region7: #{encoder_seq_gru_forward.9} parent=0 // loop_footer_branch
    %17 = sbr.rel target = $region3
  $region8: #{encoder_seq_gru_forward.9} parent=0 // loop_exit
    _

</llo_original>
